<compile_context>
chip_gen: v7x
topology: tpu7x:2x2x1
jax: 0.10.0
libtpu: 0.0.40
codegen_flags: <defaults>
</compile_context>

<pallas_src>
import math
from functools import partial

import jax
import jax.numpy as jnp
from jax import lax
from jax.experimental import pallas as pl
from jax.experimental.pallas import tpu as pltpu


# ------------------------------ tiling helpers -------------------------------

def _sublane_tile(n, cap):
    """Largest divisor of n that is a multiple of 8 and <= cap, else n (full)."""
    best = 0
    i = 1
    while i * i <= n:
        if n % i == 0:
            for d in (i, n // i):
                if d <= cap and d % 8 == 0 and d > best:
                    best = d
        i += 1
    return best if best else n


def _lane_tile(n, cap):
    """Largest divisor of n that is a multiple of 128 and <= cap, else n (full)."""
    best = 0
    i = 1
    while i * i <= n:
        if n % i == 0:
            for d in (i, n // i):
                if d <= cap and d % 128 == 0 and d > best:
                    best = d
        i += 1
    return best if best else n


# ----------------------- LayerNorm + in_proj (fused) -------------------------

def _ln_inproj_kernel(x_ref, g_ref, b_ref, wx_ref, wz_ref, xo_ref, zo_ref):
    x = x_ref[...]                                            # (tm, C) f32
    mean = jnp.mean(x, axis=-1, keepdims=True)
    xc = x - mean
    var = jnp.mean(xc * xc, axis=-1, keepdims=True)
    xn = (xc * lax.rsqrt(var + 1e-5) * g_ref[...] + b_ref[...]).astype(jnp.bfloat16)
    xo_ref[...] = jnp.dot(xn, wx_ref[...],
                          preferred_element_type=jnp.float32).astype(xo_ref.dtype)
    zo_ref[...] = jnp.dot(xn, wz_ref[...],
                          preferred_element_type=jnp.float32).astype(zo_ref.dtype)


def pallas_ln_inproj(x, g, b, wx, wz):
    """LayerNorm(x) @ [Wx | Wz]  ->  (x_part, z_part), both bf16."""
    M, C = x.shape
    D = wx.shape[1]
    tm = _sublane_tile(M, 256)
    return pl.pallas_call(
        _ln_inproj_kernel,
        out_shape=(jax.ShapeDtypeStruct((M, D), jnp.bfloat16),
                   jax.ShapeDtypeStruct((M, D), jnp.bfloat16)),
        grid=(M // tm,),
        in_specs=[pl.BlockSpec((tm, C), lambda i: (i, 0)),
                  pl.BlockSpec((1, C), lambda i: (0, 0)),
                  pl.BlockSpec((1, C), lambda i: (0, 0)),
                  pl.BlockSpec((C, D), lambda i: (0, 0)),
                  pl.BlockSpec((C, D), lambda i: (0, 0))],
        out_specs=(pl.BlockSpec((tm, D), lambda i: (i, 0)),
                   pl.BlockSpec((tm, D), lambda i: (i, 0))),
        compiler_params=pltpu.CompilerParams(
            dimension_semantics=("parallel",),
            vmem_limit_bytes=32 * 1024 * 1024),
    )(x, g, b, wx, wz)


# ------------------------ depthwise 3x3 conv + SiLU --------------------------

def _dwconv_silu_kernel(xp_ref, w_ref, b_ref, o_ref):
    # xp_ref: (H+2, W+2, TD) zero-padded input ; w_ref: (3, 3, TD) ; b_ref: (1, TD)
    H, W, TD = o_ref.shape
    xp = xp_ref[...].astype(jnp.float32)
    w = w_ref[...]
    # only 3 W-shifted views (reused for all 3 kernel rows); H shifts are
    # leading-axis slices (cheap, non-tiled axis).
    xl = xp[:, 0:W, :]
    xc = xp[:, 1:W + 1, :]
    xr = xp[:, 2:W + 2, :]
    r0 = xl * w[0, 0] + xc * w[0, 1] + xr * w[0, 2]
    r1 = xl * w[1, 0] + xc * w[1, 1] + xr * w[1, 2]
    r2 = xl * w[2, 0] + xc * w[2, 1] + xr * w[2, 2]
    acc = r0[0:H] + r1[1:H + 1] + r2[2:H + 2] + b_ref[...]
    o_ref[...] = (acc * jax.nn.sigmoid(acc)).astype(o_ref.dtype)


def pallas_dwconv_silu(x, w, b):
    """Depthwise 3x3 conv (padding=1) + bias + SiLU, NHWC, channel-tiled, bf16 out."""
    B, H, W, D = x.shape
    # TODO(synk): for large H,W tile H with an in-kernel halo instead of this
    # host-side pad (one extra bf16 activation round trip through HBM).
    xp = jnp.pad(x, ((0, 0), (1, 1), (1, 1), (0, 0)))
    td = _lane_tile(D, 512)
    return pl.pallas_call(
        _dwconv_silu_kernel,
        out_shape=jax.ShapeDtypeStruct((B, H, W, D), jnp.bfloat16),
        grid=(B, D // td),
        in_specs=[pl.BlockSpec((None, H + 2, W + 2, td), lambda i, d: (i, 0, 0, d)),
                  pl.BlockSpec((3, 3, td), lambda i, d: (0, 0, d)),
                  pl.BlockSpec((1, td), lambda i, d: (0, d))],
        out_specs=pl.BlockSpec((None, H, W, td), lambda i, d: (i, 0, 0, d)),
        compiler_params=pltpu.CompilerParams(
            dimension_semantics=("parallel", "parallel"),
            vmem_limit_bytes=32 * 1024 * 1024),
    )(xp, w, b)


# -------------------- fused 4-direction selective scan -----------------------

def _selective_scan_kernel(u_ref, wdt_ref, wb_ref, wc_ref, a_ref, bias_ref,
                           dsk_ref, y_ref, dA_s, hbu_s, hc_ref, *, unroll):
    # One grid step = (direction k, batch b, L-chunk c).
    #   u_ref : (CL, D) bf16    wdt : (D, D)  wb/wc : (D, N)   (bf16)
    #   a_ref : (N, D) f32      bias/dsk : (1, D) f32
    #   y_ref : (CL, D) f32
    # Scratch: dA_s, hbu_s : (CL, N, D) f32 ; hc_ref : (N, D) f32 carry.
    k = pl.program_id(0)
    chunk = pl.program_id(2)
    CL, D = u_ref.shape

    @pl.when(chunk == 0)
    def _():
        hc_ref[...] = jnp.zeros_like(hc_ref)

    u_bf = u_ref[...]
    u = u_bf.astype(jnp.float32)

    # fused x_proj ∘ dt_proj (pre-composed weights); MXU is otherwise idle here
    dt = jnp.dot(u_bf, wdt_ref[...], preferred_element_type=jnp.float32)   # (CL, D)
    Bc = jnp.dot(u_bf, wb_ref[...], preferred_element_type=jnp.float32)    # (CL, N)
    Cc = jnp.dot(u_bf, wc_ref[...], preferred_element_type=jnp.float32)    # (CL, N)

    # --- vectorized precompute over the whole chunk (off the serial path) ----
    xdt = dt + bias_ref[...]
    delta = jnp.maximum(xdt, 0.0) + jnp.log(1.0 + jnp.exp(-jnp.abs(xdt)))  # softplus
    du = delta * u
    A = a_ref[...]                                                          # (N, D)
    dA_s[...] = jnp.exp(delta[:, None, :] * A[None, :, :])                  # (CL,N,D)
    hbu_s[...] = du[:, None, :] * Bc[:, :, None]                            # (CL,N,D)

    # --- serial recurrence (directions 2,3 iterate the chunk in reverse) -----
    rev = k // 2                       # 0 = forward, 1 = reverse
    base = rev * (CL - 1)
    stp = 1 - 2 * rev

    def step(s, h):
        idx = base + stp * s
        h = dA_s[idx] * h + hbu_s[idx]
        hbu_s[idx] = h                 # reuse scratch to hold all h states
        return h

    h_last = lax.fori_loop(0, CL, step, hc_ref[...], unroll=unroll)
    hc_ref[...] = h_last

    # --- vectorized epilogue: C-reduction (sublane reduce) + D-skip ----------
    y = jnp.sum(hbu_s[...] * Cc[:, :, None], axis=1)                        # (CL, D)
    y_ref[...] = (y + dsk_ref[...] * u).astype(y_ref.dtype)


def pallas_selective_scan(xs2, wdt, wb, wc, A, dt_bias, Ds):
    """All 4 scan directions in one pallas_call, projections fused in-kernel.

    xs2 : (2, B, L, D) bf16  -- row-major / col-major orderings of conv output
    wdt : (4, D, D) bf16 ; wb, wc : (4, D, N) bf16
    A   : (4, N, D) f32  ; dt_bias, Ds : (4, 1, D) f32
    -> y : (4, B, L, D) f32   (reverse directions already stored un-flipped)
    """
    _, B, L, D = xs2.shape
    N = A.shape[1]
    K = 4

    # chunk: largest multiple-of-8 divisor of L keeping the two (cl,N,D) f32
    # scratch slabs within ~6 MiB (fits v5e/v6e/v7x VMEM with headroom).
    cap = max(8, (6 * 1024 * 1024) // (8 * N * D))
    cl = _sublane_tile(L, min(256, cap))
    nc = L // cl
    unroll = 8 if cl % 8 == 0 else 1

    def data_map(k, b, c):
        r = k // 2
        ci = c + r * (nc - 1 - 2 * c)          # reverse chunk order for k in {2,3}
        return (k % 2, b, ci, 0)

    def out_map(k, b, c):
        r = k // 2
        ci = c + r * (nc - 1 - 2 * c)
        return (k, b, ci, 0)

    def w_map(k, b, c):
        return (k, 0, 0)

    scratch_bytes = (2 * cl + 1) * N * D * 4
    io_bytes = 2 * 2 * cl * D * (2 + 4)        # double-buffered u (bf16) + y (f32)
    vmem_limit = int(min(max(scratch_bytes + io_bytes + (8 << 20), 16 << 20),
                         40 << 20))

    return pl.pallas_call(
        partial(_selective_scan_kernel, unroll=unroll),
        out_shape=jax.ShapeDtypeStruct((K, B, L, D), jnp.float32),
        grid=(K, B, nc),
        in_specs=[
            pl.BlockSpec((None, None, cl, D), data_map),     # u (ordering = k % 2)
            pl.BlockSpec((None, D, D), w_map),               # composed dt weight
            pl.BlockSpec((None, D, N), w_map),               # B weight
            pl.BlockSpec((None, D, N), w_map),               # C weight
            pl.BlockSpec((None, N, D), w_map),               # A
            pl.BlockSpec((None, 1, D), w_map),               # dt bias
            pl.BlockSpec((None, 1, D), w_map),               # D skip
        ],
        out_specs=pl.BlockSpec((None, None, cl, D), out_map),
        scratch_shapes=[
            pltpu.VMEM((cl, N, D), jnp.float32),             # exp(delta * A)
            pltpu.VMEM((cl, N, D), jnp.float32),             # delta*B*u -> h states
            pltpu.VMEM((N, D), jnp.float32),                 # h carry across chunks
        ],
        compiler_params=pltpu.CompilerParams(
            dimension_semantics=("parallel", "parallel", "arbitrary"),
            vmem_limit_bytes=vmem_limit),
    )(xs2, wdt, wb, wc, A, dt_bias, Ds)


# ---------------- 4-direction sum + out_norm + SiLU gate ---------------------

def _norm_gate_kernel(ya_ref, yb_ref, yc_ref, z_ref, g_ref, b_ref, o_ref):
    y = ya_ref[...] + yb_ref[...] + yc_ref[...]               # (tm, D) f32
    mean = jnp.mean(y, axis=-1, keepdims=True)
    yd = y - mean
    var = jnp.mean(yd * yd, axis=-1, keepdims=True)
    yn = yd * lax.rsqrt(var + 1e-5) * g_ref[...] + b_ref[...]
    z = z_ref[...].astype(jnp.float32)
    o_ref[...] = (yn * (z * jax.nn.sigmoid(z))).astype(o_ref.dtype)


def pallas_norm_gate(y4, y_col, z, g, b):
    """LN(y0 + y2 + y_col) * SiLU(z) -> bf16. y4 holds the scan output."""
    _, M, D = y4.shape
    tm = _sublane_tile(M, 256)
    return pl.pallas_call(
        _norm_gate_kernel,
        out_shape=jax.ShapeDtypeStruct((M, D), jnp.bfloat16),
        grid=(M // tm,),
        in_specs=[pl.BlockSpec((None, tm, D), lambda i: (0, i, 0)),   # direction 0
                  pl.BlockSpec((None, tm, D), lambda i: (2, i, 0)),   # direction 2
                  pl.BlockSpec((tm, D), lambda i: (i, 0)),            # dirs 1+3 (row order)
                  pl.BlockSpec((tm, D), lambda i: (i, 0)),            # z gate
                  pl.BlockSpec((1, D), lambda i: (0, 0)),
                  pl.BlockSpec((1, D), lambda i: (0, 0))],
        out_specs=pl.BlockSpec((tm, D), lambda i: (i, 0)),
        compiler_params=pltpu.CompilerParams(
            dimension_semantics=("parallel",),
            vmem_limit_bytes=32 * 1024 * 1024),
    )(y4, y4, y_col, z, g, b)


# ---------------------- out_proj + residual add (fused) ----------------------

def _matmul_residual_kernel(a_ref, w_ref, r_ref, o_ref):
    o_ref[...] = (jnp.dot(a_ref[...], w_ref[...],
                          preferred_element_type=jnp.float32)
                  + r_ref[...]).astype(o_ref.dtype)


def pallas_out_proj_residual(a, w, resid):
    M, D = a.shape
    C = w.shape[1]
    tm = _sublane_tile(M, 256)
    return pl.pallas_call(
        _matmul_residual_kernel,
        out_shape=jax.ShapeDtypeStruct((M, C), jnp.float32),
        grid=(M // tm,),
        in_specs=[pl.BlockSpec((tm, D), lambda i: (i, 0)),
                  pl.BlockSpec((D, C), lambda i: (0, 0)),
                  pl.BlockSpec((tm, C), lambda i: (i, 0))],
        out_specs=pl.BlockSpec((tm, C), lambda i: (i, 0)),
        compiler_params=pltpu.CompilerParams(
            dimension_semantics=("parallel",),
            vmem_limit_bytes=32 * 1024 * 1024),
    )(a, w, resid)


# ------------------------------- model glue ----------------------------------

def vss_block_forward(x, p):
    """VSSBlock.forward (use_modulation=False, DropPath(0.0) = identity)."""
    B, H, W, C = x.shape
    D = p['d_inner']
    L = H * W
    M = B * L
    x2d = x.reshape(M, C)

    # ln_1 fused into in_proj; two bf16 outputs (x-part, z gate)
    xh, z = pallas_ln_inproj(x2d, p['ln1_g'], p['ln1_b'], p['in_wx'], p['in_wz'])

    # depthwise 3x3 conv + SiLU
    xc = pallas_dwconv_silu(xh.reshape(B, H, W, D), p['conv_w'], p['conv_b'])

    # the two scan orderings (row-major l=h*W+w, col-major l=w*H+h); the two
    # reversed directions are handled inside the scan (no flipped copies).
    xs2 = jnp.stack([xc.reshape(B, L, D),
                     jnp.transpose(xc, (0, 2, 1, 3)).reshape(B, L, D)], axis=0)

    A = -jnp.exp(p['A_log'])                                   # (4, N, D)
    y4 = pallas_selective_scan(xs2, p['wdt'], p['wb'], p['wc'],
                               A, p['dt_bias'], p['Ds'])       # (4, B, L, D) f32

    # col-ordered directions back to row order (one fused XLA add+transpose)
    y_col = (y4[1] + y4[3]).reshape(B, W, H, D)
    y_col = jnp.transpose(y_col, (0, 2, 1, 3)).reshape(M, D)

    # 4-direction sum + out_norm + y*SiLU(z), then out_proj + residual add
    yg = pallas_norm_gate(y4.reshape(4, M, D), y_col, z,
                          p['out_norm_g'], p['out_norm_b'])
    out = pallas_out_proj_residual(yg, p['out_wT'], x2d)
    return out.reshape(B, H, W, C)


def vss_layer_forward(x, condition, block_params):
    # TODO(synk): modulation branch (use_modulation=True) is never enabled by
    # VSSLayer; condition is therefore unused. Dropout/DropPath rates are 0.
    del condition
    for p in block_params:
        x = vss_block_forward(x, p)
    return x               # downsample=None


# --------------------------- parameter creation ------------------------------

def init_block_params(key, d_model, d_state=16, d_conv=3, expand=2):
    d_inner = int(expand * d_model)
    dt_rank = math.ceil(d_model / 16)
    K, R, N, D = 4, dt_rank, d_state, d_inner
    ks = jax.random.split(key, 8)

    def w(k, shape, scale=0.02):
        return scale * jax.random.normal(k, shape, jnp.float32)

    # dt bias init following SS2D.dt_init (synthetic weights)
    dt_min, dt_max, dt_floor = 1e-3, 1e-1, 1e-4
    dt = jnp.exp(jax.random.uniform(ks[5], (K, D)) *
                 (math.log(dt_max) - math.log(dt_min)) + math.log(dt_min))
    dt = jnp.maximum(dt, dt_floor)
    inv_dt = dt + jnp.log(-jnp.expm1(-dt))                     # (K, D)

    # A_log[k, n, d] = log(n + 1), stored with D on the lane axis
    A_log = jnp.log(jnp.arange(1, N + 1, dtype=jnp.float32))
    A_log = jnp.broadcast_to(A_log[None, :, None], (K, N, D))

    in_proj_w = w(ks[0], (2 * D, d_model))                     # (2D, C)
    x_proj_w = w(ks[3], (K, R + 2 * N, D))                     # (K, R+2N, D)
    dt_proj_w = w(ks[4], (K, D, R), scale=R ** -0.5)           # (K, D, R)
    out_proj_w = w(ks[6], (d_model, D))                        # (C, D)

    # Pre-compose dt_proj ∘ x_proj into one (D -> D) right-multiplied weight
    # per direction: x @ wdt == ((x @ x_proj[:R].T) @ dt_proj.T).
    wdt = jnp.einsum('kdr,krc->kcd', dt_proj_w, x_proj_w[:, :R, :])   # (K, D, D)
    wb = jnp.transpose(x_proj_w[:, R:R + N, :], (0, 2, 1))            # (K, D, N)
    wc = jnp.transpose(x_proj_w[:, R + N:, :], (0, 2, 1))             # (K, D, N)

    return dict(
        d_inner=D,
        ln1_g=jnp.ones((1, d_model), jnp.float32),
        ln1_b=jnp.zeros((1, d_model), jnp.float32),
        in_wx=in_proj_w[:D].T.astype(jnp.bfloat16),            # (C, D)
        in_wz=in_proj_w[D:].T.astype(jnp.bfloat16),            # (C, D)
        conv_w=w(ks[1], (d_conv, d_conv, D), scale=0.1),
        conv_b=w(ks[2], (1, D), scale=0.1),
        wdt=wdt.astype(jnp.bfloat16),
        wb=wb.astype(jnp.bfloat16),
        wc=wc.astype(jnp.bfloat16),
        dt_bias=inv_dt.reshape(K, 1, D),                       # (K, 1, D)
        A_log=A_log,                                           # (K, N, D)
        Ds=jnp.ones((K, 1, D), jnp.float32),
        out_norm_g=jnp.ones((1, D), jnp.float32),
        out_norm_b=jnp.zeros((1, D), jnp.float32),
        out_wT=out_proj_w.T.astype(jnp.bfloat16),              # (D, C)
    )


# ----------------------------------- main -------------------------------------

if __name__ == "__main__":
    key = jax.random.PRNGKey(0)
    B, H, W, C = 2, 16, 16, 32      # dim=32 -> d_inner=64, dt_rank=2, d_state=16
    depth = 2

    k_x, k_c, k_p = jax.random.split(key, 3)
    x = jax.random.normal(k_x, (B, H, W, C), jnp.float32)
    condition = jax.random.normal(k_c, (B, 2), jnp.float32)    # unused (no modulation)
    block_params = [init_block_params(k, C, d_state=16)
                    for k in jax.random.split(k_p, depth)]

    out = vss_layer_forward(x, condition, block_params)
    out = jax.block_until_ready(out)
    assert out.shape == (B, H, W, C)
    assert bool(jnp.all(jnp.isfinite(out)))
    print("KERNEL_OK")
</pallas_src>

<mosaic_0001>
module attributes {stable_mosaic.version = 11 : i64} {
  func.func @_ln_inproj_kernel(%arg0: i32, %arg1: memref<256x32xf32, #tpu.memory_space<vmem>>, %arg2: memref<1x32xf32, #tpu.memory_space<vmem>>, %arg3: memref<1x32xf32, #tpu.memory_space<vmem>>, %arg4: memref<32x64xbf16, #tpu.memory_space<vmem>>, %arg5: memref<32x64xbf16, #tpu.memory_space<vmem>>, %arg6: memref<256x64xbf16, #tpu.memory_space<vmem>>, %arg7: memref<256x64xbf16, #tpu.memory_space<vmem>>) attributes {dimension_semantics = [#tpu.dimension_semantics<parallel>], iteration_bounds = array<i64: 2>, scalar_prefetch = 0 : i64, scratch_operands = 0 : i64, tpu.core_type = #tpu.core_type<tc>, window_params = [{transform_indices = @transform_0, window_bounds = array<i64: 256, 32>}, {pipeline_mode = #tpu.pipeline_mode<synchronous>, transform_indices = @transform_1, window_bounds = array<i64: 1, 32>}, {pipeline_mode = #tpu.pipeline_mode<synchronous>, transform_indices = @transform_2, window_bounds = array<i64: 1, 32>}, {pipeline_mode = #tpu.pipeline_mode<synchronous>, transform_indices = @transform_3, window_bounds = array<i64: 32, 64>}, {pipeline_mode = #tpu.pipeline_mode<synchronous>, transform_indices = @transform_4, window_bounds = array<i64: 32, 64>}, {transform_indices = @transform_5, window_bounds = array<i64: 256, 64>}, {transform_indices = @transform_6, window_bounds = array<i64: 256, 64>}]} {
    %c0 = arith.constant 0 : index
    %c0_0 = arith.constant 0 : index
    %0 = vector.load %arg1[%c0, %c0_0] : memref<256x32xf32, #tpu.memory_space<vmem>>, vector<256x32xf32>
    %cst = arith.constant dense<0.000000e+00> : vector<256xf32>
    %1 = vector.multi_reduction <add>, %0, %cst [1] : vector<256x32xf32> to vector<256xf32>
    %2 = vector.shape_cast %1 : vector<256xf32> to vector<256x1xf32>
    %cst_1 = arith.constant 3.200000e+01 : f32
    %3 = vector.broadcast %cst_1 : f32 to vector<256x1xf32>
    %4 = arith.divf %2, %3 : vector<256x1xf32>
    %5 = vector.broadcast %4 : vector<256x1xf32> to vector<256x32xf32>
    %6 = arith.subf %0, %5 : vector<256x32xf32>
    %7 = arith.mulf %6, %6 : vector<256x32xf32>
    %cst_2 = arith.constant dense<0.000000e+00> : vector<256xf32>
    %8 = vector.multi_reduction <add>, %7, %cst_2 [1] : vector<256x32xf32> to vector<256xf32>
    %9 = vector.shape_cast %8 : vector<256xf32> to vector<256x1xf32>
    %cst_3 = arith.constant 3.200000e+01 : f32
    %10 = vector.broadcast %cst_3 : f32 to vector<256x1xf32>
    %11 = arith.divf %9, %10 : vector<256x1xf32>
    %cst_4 = arith.constant 9.99999974E-6 : f32
    %12 = vector.broadcast %cst_4 : f32 to vector<256x1xf32>
    %13 = arith.addf %11, %12 : vector<256x1xf32>
    %14 = math.rsqrt %13 : vector<256x1xf32>
    %15 = vector.broadcast %14 : vector<256x1xf32> to vector<256x32xf32>
    %16 = arith.mulf %6, %15 : vector<256x32xf32>
    %c0_5 = arith.constant 0 : index
    %c0_6 = arith.constant 0 : index
    %17 = vector.load %arg2[%c0_5, %c0_6] : memref<1x32xf32, #tpu.memory_space<vmem>>, vector<1x32xf32>
    %18 = vector.broadcast %17 : vector<1x32xf32> to vector<256x32xf32>
    %19 = arith.mulf %16, %18 : vector<256x32xf32>
    %c0_7 = arith.constant 0 : index
    %c0_8 = arith.constant 0 : index
    %20 = vector.load %arg3[%c0_7, %c0_8] : memref<1x32xf32, #tpu.memory_space<vmem>>, vector<1x32xf32>
    %21 = vector.broadcast %20 : vector<1x32xf32> to vector<256x32xf32>
    %22 = arith.addf %19, %21 : vector<256x32xf32>
    %23 = arith.truncf %22 : vector<256x32xf32> to vector<256x32xbf16>
    %c0_9 = arith.constant 0 : index
    %c0_10 = arith.constant 0 : index
    %24 = vector.load %arg4[%c0_9, %c0_10] : memref<32x64xbf16, #tpu.memory_space<vmem>>, vector<32x64xbf16>
    %cst_11 = arith.constant dense<0.000000e+00> : vector<256x64xf32>
    %25 = tpu.matmul %23, %24, %cst_11 {dimension_numbers = #tpu.dot_dimension_numbers<[1], [0], [0], [1], [0, 0, 1, 1], [], []>} : vector<256x32xbf16>, vector<32x64xbf16>, vector<256x64xf32> -> vector<256x64xf32>
    %26 = arith.truncf %25 : vector<256x64xf32> to vector<256x64xbf16>
    %c0_12 = arith.constant 0 : index
    %c0_13 = arith.constant 0 : index
    %27 = vector.load %arg6[%c0_12, %c0_13] : memref<256x64xbf16, #tpu.memory_space<vmem>>, vector<256x64xbf16>
    tpu.vector_store %arg6[%c0_12, %c0_13], %26 {strides = array<i32>} : memref<256x64xbf16, #tpu.memory_space<vmem>>, vector<256x64xbf16>,
    %c0_14 = arith.constant 0 : index
    %c0_15 = arith.constant 0 : index
    %28 = vector.load %arg5[%c0_14, %c0_15] : memref<32x64xbf16, #tpu.memory_space<vmem>>, vector<32x64xbf16>
    %cst_16 = arith.constant dense<0.000000e+00> : vector<256x64xf32>
    %29 = tpu.matmul %23, %28, %cst_16 {dimension_numbers = #tpu.dot_dimension_numbers<[1], [0], [0], [1], [0, 0, 1, 1], [], []>} : vector<256x32xbf16>, vector<32x64xbf16>, vector<256x64xf32> -> vector<256x64xf32>
    %30 = arith.truncf %29 : vector<256x64xf32> to vector<256x64xbf16>
    %c0_17 = arith.constant 0 : index
    %c0_18 = arith.constant 0 : index
    %31 = vector.load %arg7[%c0_17, %c0_18] : memref<256x64xbf16, #tpu.memory_space<vmem>>, vector<256x64xbf16>
    tpu.vector_store %arg7[%c0_17, %c0_18], %30 {strides = array<i32>} : memref<256x64xbf16, #tpu.memory_space<vmem>>, vector<256x64xbf16>,
    return
  }
  func.func @transform_0(%arg0: i32) -> (i32, i32) {
    %c0_i32 = arith.constant 0 : i32
    %c0_i32_0 = arith.constant 0 : i32
    return %arg0, %c0_i32 : i32, i32
  }
  func.func @transform_1(%arg0: i32) -> (i32, i32) {
    %c0_i32 = arith.constant 0 : i32
    %c0_i32_0 = arith.constant 0 : i32
    %c0_i32_1 = arith.constant 0 : i32
    return %c0_i32, %c0_i32_0 : i32, i32
  }
  func.func @transform_2(%arg0: i32) -> (i32, i32) {
    %c0_i32 = arith.constant 0 : i32
    %c0_i32_0 = arith.constant 0 : i32
    %c0_i32_1 = arith.constant 0 : i32
    return %c0_i32, %c0_i32_0 : i32, i32
  }
  func.func @transform_3(%arg0: i32) -> (i32, i32) {
    %c0_i32 = arith.constant 0 : i32
    %c0_i32_0 = arith.constant 0 : i32
    %c0_i32_1 = arith.constant 0 : i32
    return %c0_i32, %c0_i32_0 : i32, i32
  }
  func.func @transform_4(%arg0: i32) -> (i32, i32) {
    %c0_i32 = arith.constant 0 : i32
    %c0_i32_0 = arith.constant 0 : i32
    %c0_i32_1 = arith.constant 0 : i32
    return %c0_i32, %c0_i32_0 : i32, i32
  }
  func.func @transform_5(%arg0: i32) -> (i32, i32) {
    %c0_i32 = arith.constant 0 : i32
    %c0_i32_0 = arith.constant 0 : i32
    return %arg0, %c0_i32 : i32, i32
  }
  func.func @transform_6(%arg0: i32) -> (i32, i32) {
    %c0_i32 = arith.constant 0 : i32
    %c0_i32_0 = arith.constant 0 : i32
    return %arg0, %c0_i32 : i32, i32
  }
}

</mosaic_0001>

<llo_original>
// kernel: tpu_custom_call.1
$region0: #{tpu_custom_call.1}
  #allocation0 [shape = 'u32[]', space=smem, size = 0x4, offset = 0x4, fixed_abs, tag = 'smem constant byte address 0x4 - core index']
  #allocation1 [shape = 'u32[144,128]{1,0:T(1,128)}', space=vmem, size = 0x12000, scoped, tag = 'internal scratch']
  %s0 = inlined_call_operand.vmem [shape: f32[512,32], index: 0, kind: input, shape index: {}]
  %s1 = inlined_call_operand.vmem [shape: f32[1,32], index: 1, kind: input, shape index: {}]
  %s2 = inlined_call_operand.vmem [shape: f32[1,32], index: 2, kind: input, shape index: {}]
  %s3 = inlined_call_operand.vmem [shape: bf16[32,64], index: 3, kind: input, shape index: {}]
  %s4 = inlined_call_operand.vmem [shape: bf16[32,64], index: 4, kind: input, shape index: {}]
  %s5 = inlined_call_operand.vmem [shape: bf16[512,64], index: 5, kind: output, shape index: {0}]
  %s6 = inlined_call_operand.vmem [shape: bf16[512,64], index: 6, kind: output, shape index: {1}]
  %7 = xla_tuple %s5, %s6
  %s8 = sld [smem:[#allocation0]]
  $region61: #{tpu_custom_call.1} parent=0
    _
  %s10 = ssub.s32 1, %s8
  %s11 = scalar_select 0, %s10, %s8
  loop: start=0, step=1, limit=4
  $region2: #{tpu_custom_call.1} parent=0 // loop_pre_header
    _
  $region3: #{tpu_custom_call.1} parent=0 // loop_header
    %s13 = sphi 0, %s17
    %p14 = scmp.ge.s32.totalorder %s13, 4
    %s23 = sphi 0, %s25
    %s26 = sphi 0, %s23
    %s27 = sphi 0, %s26
    %s43 = sphi 0, %s27
    %s47 = sphi 0, %s47
    %s49 = sphi 0, %s47
    %s50 = sphi 0, %s49
    %s64 = sphi 0, %s50
    %s68 = sphi 0, %s68
    %s70 = sphi 0, %s68
    %s71 = sphi 0, %s70
    %s85 = sphi 0, %s71
    %s89 = sphi 0, %s89
    %s91 = sphi 0, %s89
    %s92 = sphi 0, %s91
    %s106 = sphi 0, %s92
    %s110 = sphi 0, %s110
    %s112 = sphi 0, %s110
    %s113 = sphi 0, %s112
    %s127 = sphi 0, %s113
    %s133 = sphi 0, %s135
    %s136 = sphi 0, %s133
    %s137 = sphi 0, %s136
    %s153 = sphi 0, %s137
    %s159 = sphi 0, %s161
    %s162 = sphi 0, %s159
    %s163 = sphi 0, %s162
    %s179 = sphi 0, %s163
  $region4: #{tpu_custom_call.1} parent=0 // loop_header_branch
    %16 = sbr.rel (%p14) target = $region8
  $region5: #{tpu_custom_call.1} parent=0 // loop_body
    %s18 = ssub.s32 %s13, 1
    %s19 = ssub.s32 %s13, 2
    %s20 = sadd.s32 %s13, 1
    %s21 = ssub.s32 %s13, %s20
    %p22 = scmp.eq.s32.totalorder %s21, 0
    %s24 = sadd.s32 %s23, 1
    %s25 = scalar_select %p22, %s23, %s24
    %p28 = pneg %p22
    %p29 = scmp.eq.s32.totalorder %s13, 1
    %p30 = por %p28, %p29
    %p31 = scmp.ne.s32.totalorder %s23, %s26
    %p32 = scmp.eq.s32.totalorder %s13, 0
    %p33 = por %p31, %p32
    %p34 = scmp.ne.s32.totalorder %s23, %s26
    %p35 = scmp.eq.s32.totalorder %s18, 1
    %p36 = por %p34, %p35
    %p37 = scmp.ne.s32.totalorder %s26, %s27
    %p38 = scmp.eq.s32.totalorder %s18, 0
    %p39 = por %p37, %p38
    %p40 = scmp.ne.s32.totalorder %s26, %s27
    %p41 = scmp.eq.s32.totalorder %s19, 1
    %p42 = por %p40, %p41
    %p44 = scmp.ne.s32.totalorder %s27, %s43
    %p45 = scmp.eq.s32.totalorder %s19, 0
    %p46 = por %p44, %p45
    %s48 = sadd.s32 %s47, 1
    %p51 = scmp.eq.s32.totalorder %s13, 1
    %p52 = scmp.ne.s32.totalorder %s47, %s49
    %p53 = scmp.eq.s32.totalorder %s13, 0
    %p54 = por %p52, %p53
    %p55 = scmp.ne.s32.totalorder %s47, %s49
    %p56 = scmp.eq.s32.totalorder %s18, 1
    %p57 = por %p55, %p56
    %p58 = scmp.ne.s32.totalorder %s49, %s50
    %p59 = scmp.eq.s32.totalorder %s18, 0
    %p60 = por %p58, %p59
    %p61 = scmp.ne.s32.totalorder %s49, %s50
    %p62 = scmp.eq.s32.totalorder %s19, 1
    %p63 = por %p61, %p62
    %p65 = scmp.ne.s32.totalorder %s50, %s64
    %p66 = scmp.eq.s32.totalorder %s19, 0
    %p67 = por %p65, %p66
    %s69 = sadd.s32 %s68, 1
    %p72 = scmp.eq.s32.totalorder %s13, 1
    %p73 = scmp.ne.s32.totalorder %s68, %s70
    %p74 = scmp.eq.s32.totalorder %s13, 0
    %p75 = por %p73, %p74
    %p76 = scmp.ne.s32.totalorder %s68, %s70
    %p77 = scmp.eq.s32.totalorder %s18, 1
    %p78 = por %p76, %p77
    %p79 = scmp.ne.s32.totalorder %s70, %s71
    %p80 = scmp.eq.s32.totalorder %s18, 0
    %p81 = por %p79, %p80
    %p82 = scmp.ne.s32.totalorder %s70, %s71
    %p83 = scmp.eq.s32.totalorder %s19, 1
    %p84 = por %p82, %p83
    %p86 = scmp.ne.s32.totalorder %s71, %s85
    %p87 = scmp.eq.s32.totalorder %s19, 0
    %p88 = por %p86, %p87
    %s90 = sadd.s32 %s89, 1
    %p93 = scmp.eq.s32.totalorder %s13, 1
    %p94 = scmp.ne.s32.totalorder %s89, %s91
    %p95 = scmp.eq.s32.totalorder %s13, 0
    %p96 = por %p94, %p95
    %p97 = scmp.ne.s32.totalorder %s89, %s91
    %p98 = scmp.eq.s32.totalorder %s18, 1
    %p99 = por %p97, %p98
    %p100 = scmp.ne.s32.totalorder %s91, %s92
    %p101 = scmp.eq.s32.totalorder %s18, 0
    %p102 = por %p100, %p101
    %p103 = scmp.ne.s32.totalorder %s91, %s92
    %p104 = scmp.eq.s32.totalorder %s19, 1
    %p105 = por %p103, %p104
    %p107 = scmp.ne.s32.totalorder %s92, %s106
    %p108 = scmp.eq.s32.totalorder %s19, 0
    %p109 = por %p107, %p108
    %s111 = sadd.s32 %s110, 1
    %p114 = scmp.eq.s32.totalorder %s13, 1
    %p115 = scmp.ne.s32.totalorder %s110, %s112
    %p116 = scmp.eq.s32.totalorder %s13, 0
    %p117 = por %p115, %p116
    %p118 = scmp.ne.s32.totalorder %s110, %s112
    %p119 = scmp.eq.s32.totalorder %s18, 1
    %p120 = por %p118, %p119
    %p121 = scmp.ne.s32.totalorder %s112, %s113
    %p122 = scmp.eq.s32.totalorder %s18, 0
    %p123 = por %p121, %p122
    %p124 = scmp.ne.s32.totalorder %s112, %s113
    %p125 = scmp.eq.s32.totalorder %s19, 1
    %p126 = por %p124, %p125
    %p128 = scmp.ne.s32.totalorder %s113, %s127
    %p129 = scmp.eq.s32.totalorder %s19, 0
    %p130 = por %p128, %p129
    %s131 = ssub.s32 %s13, %s20
    %p132 = scmp.eq.s32.totalorder %s131, 0
    %s134 = sadd.s32 %s133, 1
    %s135 = scalar_select %p132, %s133, %s134
    %p138 = pneg %p132
    %p139 = scmp.eq.s32.totalorder %s13, 1
    %p140 = por %p138, %p139
    %p141 = scmp.ne.s32.totalorder %s133, %s136
    %p142 = scmp.eq.s32.totalorder %s13, 0
    %p143 = por %p141, %p142
    %p144 = scmp.ne.s32.totalorder %s133, %s136
    %p145 = scmp.eq.s32.totalorder %s18, 1
    %p146 = por %p144, %p145
    %p147 = scmp.ne.s32.totalorder %s136, %s137
    %p148 = scmp.eq.s32.totalorder %s18, 0
    %p149 = por %p147, %p148
    %p150 = scmp.ne.s32.totalorder %s136, %s137
    %p151 = scmp.eq.s32.totalorder %s19, 1
    %p152 = por %p150, %p151
    %p154 = scmp.ne.s32.totalorder %s137, %s153
    %p155 = scmp.eq.s32.totalorder %s19, 0
    %p156 = por %p154, %p155
    %s157 = ssub.s32 %s13, %s20
    %p158 = scmp.eq.s32.totalorder %s157, 0
    %s160 = sadd.s32 %s159, 1
    %s161 = scalar_select %p158, %s159, %s160
    %p164 = pneg %p158
    %p165 = scmp.eq.s32.totalorder %s13, 1
    %p166 = por %p164, %p165
    %p167 = scmp.ne.s32.totalorder %s159, %s162
    %p168 = scmp.eq.s32.totalorder %s13, 0
    %p169 = por %p167, %p168
    %p170 = scmp.ne.s32.totalorder %s159, %s162
    %p171 = scmp.eq.s32.totalorder %s18, 1
    %p172 = por %p170, %p171
    %p173 = scmp.ne.s32.totalorder %s162, %s163
    %p174 = scmp.eq.s32.totalorder %s18, 0
    %p175 = por %p173, %p174
    %p176 = scmp.ne.s32.totalorder %s162, %s163
    %p177 = scmp.eq.s32.totalorder %s19, 1
    %p178 = por %p176, %p177
    %p180 = scmp.ne.s32.totalorder %s163, %s179
    %p181 = scmp.eq.s32.totalorder %s19, 0
    %p182 = por %p180, %p181
    %p183 = scmp.le.s32.totalorder 1, %s13
    %p184 = scmp.lt.s32.totalorder %s13, 3
    %p185 = pnand %p183, %p184
    %p186 = pneg %p185
    // Predicated region
    $region9: #{tpu_custom_call.1} parent=5 // pred_check
      _
    $region10: #{tpu_custom_call.1} parent=5 // pred_check_branch
      %188 = sbr.rel (%p185) target = $region12
    $region11: #{tpu_custom_call.1} parent=5 // pred_region
      %s189 = ssub.s32 %s13, 1
      // Predicated region
      $region13: #{tpu_custom_call.1} parent=11 // pred_check
        %p190 = pneg %p60
      $region14: #{tpu_custom_call.1} parent=11 // pred_check_branch
        %192 = sbr.rel (%p190) target = $region16
      $region15: #{tpu_custom_call.1} parent=11 // pred_region
        _
      $region16: #{tpu_custom_call.1} parent=11 // pred_fallthru
        _
      // Predicated region
      $region17: #{tpu_custom_call.1} parent=11 // pred_check
        %p193 = pneg %p81
      $region18: #{tpu_custom_call.1} parent=11 // pred_check_branch
        %195 = sbr.rel (%p193) target = $region20
      $region19: #{tpu_custom_call.1} parent=11 // pred_region
        _
      $region20: #{tpu_custom_call.1} parent=11 // pred_fallthru
        _
      // Predicated region
      $region21: #{tpu_custom_call.1} parent=11 // pred_check
        %p196 = pneg %p102
      $region22: #{tpu_custom_call.1} parent=11 // pred_check_branch
        %198 = sbr.rel (%p196) target = $region24
      $region23: #{tpu_custom_call.1} parent=11 // pred_region
        _
      $region24: #{tpu_custom_call.1} parent=11 // pred_fallthru
        _
      // Predicated region
      $region25: #{tpu_custom_call.1} parent=11 // pred_check
        %p199 = pneg %p123
      $region26: #{tpu_custom_call.1} parent=11 // pred_check_branch
        %201 = sbr.rel (%p199) target = $region28
      $region27: #{tpu_custom_call.1} parent=11 // pred_region
        _
      $region28: #{tpu_custom_call.1} parent=11 // pred_fallthru
        _
    $region12: #{tpu_custom_call.1} parent=5 // pred_fallthru
      _
    %p202 = scmp.lt.s32.totalorder %s13, 2
    // Predicated region
    $region29: #{tpu_custom_call.1} parent=5 // pred_check
      %p203 = pneg %p202
    $region30: #{tpu_custom_call.1} parent=5 // pred_check_branch
      %205 = sbr.rel (%p203) target = $region32
    $region31: #{tpu_custom_call.1} parent=5 // pred_region
      // Predicated region
      $region33: #{tpu_custom_call.1} parent=31 // pred_check
        %p206 = pneg %p33
      $region34: #{tpu_custom_call.1} parent=31 // pred_check_branch
        %208 = sbr.rel (%p206) target = $region36
      $region35: #{tpu_custom_call.1} parent=31 // pred_region
        %s209 = smul.u32 32, %s13
        %p210 = scmp.lt.s32.totalorder %s209, 63
        %s211 = scalar_select %p210, %s209, 63
        %s212 = smul.addr %s211, 8
        %s213 = scalar_lea.vmem %s0, %s212
        %s214 = smul.u32 32, %s13
      $region36: #{tpu_custom_call.1} parent=31 // pred_fallthru
        _
    $region32: #{tpu_custom_call.1} parent=5 // pred_fallthru
      _
    %p215 = scmp.le.s32.totalorder 1, %s13
    %p216 = scmp.lt.s32.totalorder %s13, 3
    %p217 = pnand %p215, %p216
    %p218 = pneg %p217
    // Predicated region
    $region37: #{tpu_custom_call.1} parent=5 // pred_check
      _
    $region38: #{tpu_custom_call.1} parent=5 // pred_check_branch
      %220 = sbr.rel (%p217) target = $region40
    $region39: #{tpu_custom_call.1} parent=5 // pred_region
      %s221 = ssub.s32 %s13, 1
      %s222 = smul.u32 32, %s18
      %p223 = scmp.lt.s32.totalorder %s222, 63
      %s224 = scalar_select %p223, %s222, 63
      %s225 = smul.addr %s224, 8
      %s226 = scalar_lea.vmem %s0, %s225
      %p227 = pneg %p39
      %p228 = pneg %p36
      %p229 = pneg %p60
      %p230 = pneg %p57
      %p231 = pneg %p81
      %p232 = pneg %p78
      %p233 = pneg %p102
      %p234 = pneg %p99
      %p235 = pneg %p123
      %p236 = pneg %p120
      %p237 = pneg %p149
      %p238 = pneg %p146
      %s239 = smul.u32 32, %s18
      %p240 = scmp.lt.s32.totalorder %s239, 63
      %s241 = scalar_select %p240, %s239, 63
      %s242 = smul.addr %s241, 4
      %s243 = scalar_lea.vmem %s5, %s242
      %p244 = pneg %p175
      %p245 = pneg %p172
      %s246 = smul.u32 32, %s18
      %p247 = scmp.lt.s32.totalorder %s246, 63
      %s248 = scalar_select %p247, %s246, 63
      %s249 = smul.addr %s248, 4
      %s250 = scalar_lea.vmem %s6, %s249
      %s251 = smul.u32 32, %s18
      %p252 = scmp.lt.s32.totalorder %s251, 63
      %s253 = scalar_select %p252, %s251, 63
      %s254 = smul.addr %s253, 8
      %s255 = scalar_lea.vmem %s0, %s254
      %s256 = smul.u32 32, %s18
      %s257 = smul.u32 32, %s18
      %p258 = scmp.lt.s32.totalorder %s257, 63
      %s259 = scalar_select %p258, %s257, 63
      %s260 = smul.addr %s259, 4
      %s261 = scalar_lea.vmem %s5, %s260
      %s262 = smul.u32 32, %s18
      %s263 = smul.u32 32, %s18
      %p264 = scmp.lt.s32.totalorder %s263, 63
      %s265 = scalar_select %p264, %s263, 63
      %s266 = smul.addr %s265, 4
      %s267 = scalar_lea.vmem %s6, %s266
      %s268 = smul.u32 32, %s18
      %v270 = vld [vmem:[%s255] sm:$0xff]
      %v271 = vld [vmem:[%s255 + $0x8] sm:$0xff]
      %v272 = vld [vmem:[%s255 + $0x10] sm:$0xff]
      %v273 = vld [vmem:[%s255 + $0x18] sm:$0xff]
      %v274 = vld [vmem:[%s255 + $0x20] sm:$0xff]
      %v275 = vld [vmem:[%s255 + $0x28] sm:$0xff]
      %v276 = vld [vmem:[%s255 + $0x30] sm:$0xff]
      %v277 = vld [vmem:[%s255 + $0x38] sm:$0xff]
      %v278 = vld [vmem:[%s255 + $0x40] sm:$0xff]
      %v279 = vld [vmem:[%s255 + $0x48] sm:$0xff]
      %v280 = vld [vmem:[%s255 + $0x50] sm:$0xff]
      %v281 = vld [vmem:[%s255 + $0x58] sm:$0xff]
      %v282 = vld [vmem:[%s255 + $0x60] sm:$0xff]
      %v283 = vld [vmem:[%s255 + $0x68] sm:$0xff]
      %v284 = vld [vmem:[%s255 + $0x70] sm:$0xff]
      %v285 = vld [vmem:[%s255 + $0x78] sm:$0xff]
      %v286 = vld [vmem:[%s255 + $0x80] sm:$0xff]
      %v287 = vld [vmem:[%s255 + $0x88] sm:$0xff]
      %v288 = vld [vmem:[%s255 + $0x90] sm:$0xff]
      %v289 = vld [vmem:[%s255 + $0x98] sm:$0xff]
      %v290 = vld [vmem:[%s255 + $0xa0] sm:$0xff]
      %v291 = vld [vmem:[%s255 + $0xa8] sm:$0xff]
      %v292 = vld [vmem:[%s255 + $0xb0] sm:$0xff]
      %v293 = vld [vmem:[%s255 + $0xb8] sm:$0xff]
      %v294 = vld [vmem:[%s255 + $0xc0] sm:$0xff]
      %v295 = vld [vmem:[%s255 + $0xc8] sm:$0xff]
      %v296 = vld [vmem:[%s255 + $0xd0] sm:$0xff]
      %v297 = vld [vmem:[%s255 + $0xd8] sm:$0xff]
      %v298 = vld [vmem:[%s255 + $0xe0] sm:$0xff]
      %v299 = vld [vmem:[%s255 + $0xe8] sm:$0xff]
      %v300 = vld [vmem:[%s255 + $0xf0] sm:$0xff]
      %v301 = vld [vmem:[%s255 + $0xf8] sm:$0xff]
      %vm302 = vcmask 261120
      %v303 = vsel %vm302, %v270, 0.0
      %304 = vadd.xlane.f32.xlu0 %v303
      %v305 = vpop.xlane.xlu0 %304
      %v306 = vsel %vm302, %v271, 0.0
      %307 = vadd.xlane.f32.xlu0 %v306
      %v308 = vpop.xlane.xlu0 %307
      %v309 = vsel %vm302, %v272, 0.0
      %310 = vadd.xlane.f32.xlu0 %v309
      %v311 = vpop.xlane.xlu0 %310
      %v312 = vsel %vm302, %v273, 0.0
      %313 = vadd.xlane.f32.xlu0 %v312
      %v314 = vpop.xlane.xlu0 %313
      %v315 = vsel %vm302, %v274, 0.0
      %316 = vadd.xlane.f32.xlu0 %v315
      %v317 = vpop.xlane.xlu0 %316
      %v318 = vsel %vm302, %v275, 0.0
      %319 = vadd.xlane.f32.xlu0 %v318
      %v320 = vpop.xlane.xlu0 %319
      %v321 = vsel %vm302, %v276, 0.0
      %322 = vadd.xlane.f32.xlu0 %v321
      %v323 = vpop.xlane.xlu0 %322
      %v324 = vsel %vm302, %v277, 0.0
      %325 = vadd.xlane.f32.xlu0 %v324
      %v326 = vpop.xlane.xlu0 %325
      %v327 = vsel %vm302, %v278, 0.0
      %328 = vadd.xlane.f32.xlu0 %v327
      %v329 = vpop.xlane.xlu0 %328
      %v330 = vsel %vm302, %v279, 0.0
      %331 = vadd.xlane.f32.xlu0 %v330
      %v332 = vpop.xlane.xlu0 %331
      %v333 = vsel %vm302, %v280, 0.0
      %334 = vadd.xlane.f32.xlu0 %v333
      %v335 = vpop.xlane.xlu0 %334
      %v336 = vsel %vm302, %v281, 0.0
      %337 = vadd.xlane.f32.xlu0 %v336
      %v338 = vpop.xlane.xlu0 %337
      %v339 = vsel %vm302, %v282, 0.0
      %340 = vadd.xlane.f32.xlu0 %v339
      %v341 = vpop.xlane.xlu0 %340
      %v342 = vsel %vm302, %v283, 0.0
      %343 = vadd.xlane.f32.xlu0 %v342
      %v344 = vpop.xlane.xlu0 %343
      %v345 = vsel %vm302, %v284, 0.0
      %346 = vadd.xlane.f32.xlu0 %v345
      %v347 = vpop.xlane.xlu0 %346
      %v348 = vsel %vm302, %v285, 0.0
      %349 = vadd.xlane.f32.xlu0 %v348
      %v350 = vpop.xlane.xlu0 %349
      %v351 = vsel %vm302, %v286, 0.0
      %352 = vadd.xlane.f32.xlu0 %v351
      %v353 = vpop.xlane.xlu0 %352
      %v354 = vsel %vm302, %v287, 0.0
      %355 = vadd.xlane.f32.xlu0 %v354
      %v356 = vpop.xlane.xlu0 %355
      %v357 = vsel %vm302, %v288, 0.0
      %358 = vadd.xlane.f32.xlu0 %v357
      %v359 = vpop.xlane.xlu0 %358
      %v360 = vsel %vm302, %v289, 0.0
      %361 = vadd.xlane.f32.xlu0 %v360
      %v362 = vpop.xlane.xlu0 %361
      %v363 = vsel %vm302, %v290, 0.0
      %364 = vadd.xlane.f32.xlu0 %v363
      %v365 = vpop.xlane.xlu0 %364
      %v366 = vsel %vm302, %v291, 0.0
      %367 = vadd.xlane.f32.xlu0 %v366
      %v368 = vpop.xlane.xlu0 %367
      %v369 = vsel %vm302, %v292, 0.0
      %370 = vadd.xlane.f32.xlu0 %v369
      %v371 = vpop.xlane.xlu0 %370
      %v372 = vsel %vm302, %v293, 0.0
      %373 = vadd.xlane.f32.xlu0 %v372
      %v374 = vpop.xlane.xlu0 %373
      %v375 = vsel %vm302, %v294, 0.0
      %376 = vadd.xlane.f32.xlu0 %v375
      %v377 = vpop.xlane.xlu0 %376
      %v378 = vsel %vm302, %v295, 0.0
      %379 = vadd.xlane.f32.xlu0 %v378
      %v380 = vpop.xlane.xlu0 %379
      %v381 = vsel %vm302, %v296, 0.0
      %382 = vadd.xlane.f32.xlu0 %v381
      %v383 = vpop.xlane.xlu0 %382
      %v384 = vsel %vm302, %v297, 0.0
      %385 = vadd.xlane.f32.xlu0 %v384
      %v386 = vpop.xlane.xlu0 %385
      %v387 = vsel %vm302, %v298, 0.0
      %388 = vadd.xlane.f32.xlu0 %v387
      %v389 = vpop.xlane.xlu0 %388
      %v390 = vsel %vm302, %v299, 0.0
      %391 = vadd.xlane.f32.xlu0 %v390
      %v392 = vpop.xlane.xlu0 %391
      %v393 = vsel %vm302, %v300, 0.0
      %394 = vadd.xlane.f32.xlu0 %v393
      %v395 = vpop.xlane.xlu0 %394
      %v396 = vsel %vm302, %v301, 0.0
      %397 = vadd.xlane.f32.xlu0 %v396
      %v398 = vpop.xlane.xlu0 %397
      %v399 = vrcp.pop 32.0
      %v400 = vmul.f32 %v305, %v399
      %v401 = vmul.f32 %v308, %v399
      %v402 = vmul.f32 %v311, %v399
      %v403 = vmul.f32 %v314, %v399
      %v404 = vmul.f32 %v317, %v399
      %v405 = vmul.f32 %v320, %v399
      %v406 = vmul.f32 %v323, %v399
      %v407 = vmul.f32 %v326, %v399
      %v408 = vmul.f32 %v329, %v399
      %v409 = vmul.f32 %v332, %v399
      %v410 = vmul.f32 %v335, %v399
      %v411 = vmul.f32 %v338, %v399
      %v412 = vmul.f32 %v341, %v399
      %v413 = vmul.f32 %v344, %v399
      %v414 = vmul.f32 %v347, %v399
      %v415 = vmul.f32 %v350, %v399
      %v416 = vmul.f32 %v353, %v399
      %v417 = vmul.f32 %v356, %v399
      %v418 = vmul.f32 %v359, %v399
      %v419 = vmul.f32 %v362, %v399
      %v420 = vmul.f32 %v365, %v399
      %v421 = vmul.f32 %v368, %v399
      %v422 = vmul.f32 %v371, %v399
      %v423 = vmul.f32 %v374, %v399
      %v424 = vmul.f32 %v377, %v399
      %v425 = vmul.f32 %v380, %v399
      %v426 = vmul.f32 %v383, %v399
      %v427 = vmul.f32 %v386, %v399
      %v428 = vmul.f32 %v389, %v399
      %v429 = vmul.f32 %v392, %v399
      %v430 = vmul.f32 %v395, %v399
      %v431 = vmul.f32 %v398, %v399
      %v432 = vsub.f32 %v270, %v400
      %v433 = vsub.f32 %v271, %v401
      %v434 = vsub.f32 %v272, %v402
      %v435 = vsub.f32 %v273, %v403
      %v436 = vsub.f32 %v274, %v404
      %v437 = vsub.f32 %v275, %v405
      %v438 = vsub.f32 %v276, %v406
      %v439 = vsub.f32 %v277, %v407
      %v440 = vsub.f32 %v278, %v408
      %v441 = vsub.f32 %v279, %v409
      %v442 = vsub.f32 %v280, %v410
      %v443 = vsub.f32 %v281, %v411
      %v444 = vsub.f32 %v282, %v412
      %v445 = vsub.f32 %v283, %v413
      %v446 = vsub.f32 %v284, %v414
      %v447 = vsub.f32 %v285, %v415
      %v448 = vsub.f32 %v286, %v416
      %v449 = vsub.f32 %v287, %v417
      %v450 = vsub.f32 %v288, %v418
      %v451 = vsub.f32 %v289, %v419
      %v452 = vsub.f32 %v290, %v420
      %v453 = vsub.f32 %v291, %v421
      %v454 = vsub.f32 %v292, %v422
      %v455 = vsub.f32 %v293, %v423
      %v456 = vsub.f32 %v294, %v424
      %v457 = vsub.f32 %v295, %v425
      %v458 = vsub.f32 %v296, %v426
      %v459 = vsub.f32 %v297, %v427
      %v460 = vsub.f32 %v298, %v428
      %v461 = vsub.f32 %v299, %v429
      %v462 = vsub.f32 %v300, %v430
      %v463 = vsub.f32 %v301, %v431
      %v464 = vmul.f32 %v432, %v432
      %v465 = vmul.f32 %v433, %v433
      %v466 = vmul.f32 %v434, %v434
      %v467 = vmul.f32 %v435, %v435
      %v468 = vmul.f32 %v436, %v436
      %v469 = vmul.f32 %v437, %v437
      %v470 = vmul.f32 %v438, %v438
      %v471 = vmul.f32 %v439, %v439
      %v472 = vmul.f32 %v440, %v440
      %v473 = vmul.f32 %v441, %v441
      %v474 = vmul.f32 %v442, %v442
      %v475 = vmul.f32 %v443, %v443
      %v476 = vmul.f32 %v444, %v444
      %v477 = vmul.f32 %v445, %v445
      %v478 = vmul.f32 %v446, %v446
      %v479 = vmul.f32 %v447, %v447
      %v480 = vmul.f32 %v448, %v448
      %v481 = vmul.f32 %v449, %v449
      %v482 = vmul.f32 %v450, %v450
      %v483 = vmul.f32 %v451, %v451
      %v484 = vmul.f32 %v452, %v452
      %v485 = vmul.f32 %v453, %v453
      %v486 = vmul.f32 %v454, %v454
      %v487 = vmul.f32 %v455, %v455
      %v488 = vmul.f32 %v456, %v456
      %v489 = vmul.f32 %v457, %v457
      %v490 = vmul.f32 %v458, %v458
      %v491 = vmul.f32 %v459, %v459
      %v492 = vmul.f32 %v460, %v460
      %v493 = vmul.f32 %v461, %v461
      %v494 = vmul.f32 %v462, %v462
      %v495 = vmul.f32 %v463, %v463
      %v496 = vsel %vm302, %v464, 0.0
      %497 = vadd.xlane.f32.xlu0 %v496
      %v498 = vpop.xlane.xlu0 %497
      %v499 = vsel %vm302, %v465, 0.0
      %500 = vadd.xlane.f32.xlu0 %v499
      %v501 = vpop.xlane.xlu0 %500
      %v502 = vsel %vm302, %v466, 0.0
      %503 = vadd.xlane.f32.xlu0 %v502
      %v504 = vpop.xlane.xlu0 %503
      %v505 = vsel %vm302, %v467, 0.0
      %506 = vadd.xlane.f32.xlu0 %v505
      %v507 = vpop.xlane.xlu0 %506
      %v508 = vsel %vm302, %v468, 0.0
      %509 = vadd.xlane.f32.xlu0 %v508
      %v510 = vpop.xlane.xlu0 %509
      %v511 = vsel %vm302, %v469, 0.0
      %512 = vadd.xlane.f32.xlu0 %v511
      %v513 = vpop.xlane.xlu0 %512
      %v514 = vsel %vm302, %v470, 0.0
      %515 = vadd.xlane.f32.xlu0 %v514
      %v516 = vpop.xlane.xlu0 %515
      %v517 = vsel %vm302, %v471, 0.0
      %518 = vadd.xlane.f32.xlu0 %v517
      %v519 = vpop.xlane.xlu0 %518
      %v520 = vsel %vm302, %v472, 0.0
      %521 = vadd.xlane.f32.xlu0 %v520
      %v522 = vpop.xlane.xlu0 %521
      %v523 = vsel %vm302, %v473, 0.0
      %524 = vadd.xlane.f32.xlu0 %v523
      %v525 = vpop.xlane.xlu0 %524
      %v526 = vsel %vm302, %v474, 0.0
      %527 = vadd.xlane.f32.xlu0 %v526
      %v528 = vpop.xlane.xlu0 %527
      %v529 = vsel %vm302, %v475, 0.0
      %530 = vadd.xlane.f32.xlu0 %v529
      %v531 = vpop.xlane.xlu0 %530
      %v532 = vsel %vm302, %v476, 0.0
      %533 = vadd.xlane.f32.xlu0 %v532
      %v534 = vpop.xlane.xlu0 %533
      %v535 = vsel %vm302, %v477, 0.0
      %536 = vadd.xlane.f32.xlu0 %v535
      %v537 = vpop.xlane.xlu0 %536
      %v538 = vsel %vm302, %v478, 0.0
      %539 = vadd.xlane.f32.xlu0 %v538
      %v540 = vpop.xlane.xlu0 %539
      %v541 = vsel %vm302, %v479, 0.0
      %542 = vadd.xlane.f32.xlu0 %v541
      %v543 = vpop.xlane.xlu0 %542
      %v544 = vsel %vm302, %v480, 0.0
      %545 = vadd.xlane.f32.xlu0 %v544
      %v546 = vpop.xlane.xlu0 %545
      %v547 = vsel %vm302, %v481, 0.0
      %548 = vadd.xlane.f32.xlu0 %v547
      %v549 = vpop.xlane.xlu0 %548
      %v550 = vsel %vm302, %v482, 0.0
      %551 = vadd.xlane.f32.xlu0 %v550
      %v552 = vpop.xlane.xlu0 %551
      %v553 = vsel %vm302, %v483, 0.0
      %554 = vadd.xlane.f32.xlu0 %v553
      %v555 = vpop.xlane.xlu0 %554
      %v556 = vsel %vm302, %v484, 0.0
      %557 = vadd.xlane.f32.xlu0 %v556
      %v558 = vpop.xlane.xlu0 %557
      %v559 = vsel %vm302, %v485, 0.0
      %560 = vadd.xlane.f32.xlu0 %v559
      %v561 = vpop.xlane.xlu0 %560
      %v562 = vsel %vm302, %v486, 0.0
      %563 = vadd.xlane.f32.xlu0 %v562
      %v564 = vpop.xlane.xlu0 %563
      %v565 = vsel %vm302, %v487, 0.0
      %566 = vadd.xlane.f32.xlu0 %v565
      %v567 = vpop.xlane.xlu0 %566
      %v568 = vsel %vm302, %v488, 0.0
      %569 = vadd.xlane.f32.xlu0 %v568
      %v570 = vpop.xlane.xlu0 %569
      %v571 = vsel %vm302, %v489, 0.0
      %572 = vadd.xlane.f32.xlu0 %v571
      %v573 = vpop.xlane.xlu0 %572
      %v574 = vsel %vm302, %v490, 0.0
      %575 = vadd.xlane.f32.xlu0 %v574
      %v576 = vpop.xlane.xlu0 %575
      %v577 = vsel %vm302, %v491, 0.0
      %578 = vadd.xlane.f32.xlu0 %v577
      %v579 = vpop.xlane.xlu0 %578
      %v580 = vsel %vm302, %v492, 0.0
      %581 = vadd.xlane.f32.xlu0 %v580
      %v582 = vpop.xlane.xlu0 %581
      %v583 = vsel %vm302, %v493, 0.0
      %584 = vadd.xlane.f32.xlu0 %v583
      %v585 = vpop.xlane.xlu0 %584
      %v586 = vsel %vm302, %v494, 0.0
      %587 = vadd.xlane.f32.xlu0 %v586
      %v588 = vpop.xlane.xlu0 %587
      %v589 = vsel %vm302, %v495, 0.0
      %590 = vadd.xlane.f32.xlu0 %v589
      %v591 = vpop.xlane.xlu0 %590
      %v592 = vmul.f32 %v498, %v399
      %v593 = vmul.f32 %v501, %v399
      %v594 = vmul.f32 %v504, %v399
      %v595 = vmul.f32 %v507, %v399
      %v596 = vmul.f32 %v510, %v399
      %v597 = vmul.f32 %v513, %v399
      %v598 = vmul.f32 %v516, %v399
      %v599 = vmul.f32 %v519, %v399
      %v600 = vmul.f32 %v522, %v399
      %v601 = vmul.f32 %v525, %v399
      %v602 = vmul.f32 %v528, %v399
      %v603 = vmul.f32 %v531, %v399
      %v604 = vmul.f32 %v534, %v399
      %v605 = vmul.f32 %v537, %v399
      %v606 = vmul.f32 %v540, %v399
      %v607 = vmul.f32 %v543, %v399
      %v608 = vmul.f32 %v546, %v399
      %v609 = vmul.f32 %v549, %v399
      %v610 = vmul.f32 %v552, %v399
      %v611 = vmul.f32 %v555, %v399
      %v612 = vmul.f32 %v558, %v399
      %v613 = vmul.f32 %v561, %v399
      %v614 = vmul.f32 %v564, %v399
      %v615 = vmul.f32 %v567, %v399
      %v616 = vmul.f32 %v570, %v399
      %v617 = vmul.f32 %v573, %v399
      %v618 = vmul.f32 %v576, %v399
      %v619 = vmul.f32 %v579, %v399
      %v620 = vmul.f32 %v582, %v399
      %v621 = vmul.f32 %v585, %v399
      %v622 = vmul.f32 %v588, %v399
      %v623 = vmul.f32 %v591, %v399
      %v624 = vadd.f32 %v592, 1e-05
      %v625 = vadd.f32 %v593, 1e-05
      %v626 = vadd.f32 %v594, 1e-05
      %v627 = vadd.f32 %v595, 1e-05
      %v628 = vadd.f32 %v596, 1e-05
      %v629 = vadd.f32 %v597, 1e-05
      %v630 = vadd.f32 %v598, 1e-05
      %v631 = vadd.f32 %v599, 1e-05
      %v632 = vadd.f32 %v600, 1e-05
      %v633 = vadd.f32 %v601, 1e-05
      %v634 = vadd.f32 %v602, 1e-05
      %v635 = vadd.f32 %v603, 1e-05
      %v636 = vadd.f32 %v604, 1e-05
      %v637 = vadd.f32 %v605, 1e-05
      %v638 = vadd.f32 %v606, 1e-05
      %v639 = vadd.f32 %v607, 1e-05
      %v640 = vadd.f32 %v608, 1e-05
      %v641 = vadd.f32 %v609, 1e-05
      %v642 = vadd.f32 %v610, 1e-05
      %v643 = vadd.f32 %v611, 1e-05
      %v644 = vadd.f32 %v612, 1e-05
      %v645 = vadd.f32 %v613, 1e-05
      %v646 = vadd.f32 %v614, 1e-05
      %v647 = vadd.f32 %v615, 1e-05
      %v648 = vadd.f32 %v616, 1e-05
      %v649 = vadd.f32 %v617, 1e-05
      %v650 = vadd.f32 %v618, 1e-05
      %v651 = vadd.f32 %v619, 1e-05
      %v652 = vadd.f32 %v620, 1e-05
      %v653 = vadd.f32 %v621, 1e-05
      %v654 = vadd.f32 %v622, 1e-05
      %v655 = vadd.f32 %v623, 1e-05
      %v656 = vrsqrt.pop %v624
      %v657 = vrsqrt.pop %v625
      %v658 = vrsqrt.pop %v626
      %v659 = vrsqrt.pop %v627
      %v660 = vrsqrt.pop %v628
      %v661 = vrsqrt.pop %v629
      %v662 = vrsqrt.pop %v630
      %v663 = vrsqrt.pop %v631
      %v664 = vrsqrt.pop %v632
      %v665 = vrsqrt.pop %v633
      %v666 = vrsqrt.pop %v634
      %v667 = vrsqrt.pop %v635
      %v668 = vrsqrt.pop %v636
      %v669 = vrsqrt.pop %v637
      %v670 = vrsqrt.pop %v638
      %v671 = vrsqrt.pop %v639
      %v672 = vrsqrt.pop %v640
      %v673 = vrsqrt.pop %v641
      %v674 = vrsqrt.pop %v642
      %v675 = vrsqrt.pop %v643
      %v676 = vrsqrt.pop %v644
      %v677 = vrsqrt.pop %v645
      %v678 = vrsqrt.pop %v646
      %v679 = vrsqrt.pop %v647
      %v680 = vrsqrt.pop %v648
      %v681 = vrsqrt.pop %v649
      %v682 = vrsqrt.pop %v650
      %v683 = vrsqrt.pop %v651
      %v684 = vrsqrt.pop %v652
      %v685 = vrsqrt.pop %v653
      %v686 = vrsqrt.pop %v654
      %v687 = vrsqrt.pop %v655
      %v688 = vmul.f32 %v432, %v656
      %v689 = vmul.f32 %v433, %v657
      %v690 = vmul.f32 %v434, %v658
      %v691 = vmul.f32 %v435, %v659
      %v692 = vmul.f32 %v436, %v660
      %v693 = vmul.f32 %v437, %v661
      %v694 = vmul.f32 %v438, %v662
      %v695 = vmul.f32 %v439, %v663
      %v696 = vmul.f32 %v440, %v664
      %v697 = vmul.f32 %v441, %v665
      %v698 = vmul.f32 %v442, %v666
      %v699 = vmul.f32 %v443, %v667
      %v700 = vmul.f32 %v444, %v668
      %v701 = vmul.f32 %v445, %v669
      %v702 = vmul.f32 %v446, %v670
      %v703 = vmul.f32 %v447, %v671
      %v704 = vmul.f32 %v448, %v672
      %v705 = vmul.f32 %v449, %v673
      %v706 = vmul.f32 %v450, %v674
      %v707 = vmul.f32 %v451, %v675
      %v708 = vmul.f32 %v452, %v676
      %v709 = vmul.f32 %v453, %v677
      %v710 = vmul.f32 %v454, %v678
      %v711 = vmul.f32 %v455, %v679
      %v712 = vmul.f32 %v456, %v680
      %v713 = vmul.f32 %v457, %v681
      %v714 = vmul.f32 %v458, %v682
      %v715 = vmul.f32 %v459, %v683
      %v716 = vmul.f32 %v460, %v684
      %v717 = vmul.f32 %v461, %v685
      %v718 = vmul.f32 %v462, %v686
      %v719 = vmul.f32 %v463, %v687
      %v720 = vld [vmem:[%s1] sm:$0x1]
      %v722 = vlaneseq
      %v723 = vshrl.u32 %v722, 7
      %v724 = vsub.s32 0, %v723
      %v725 = vrot.slane %v720, %v724
      %v727 = vmul.f32 %v688, %v725
      %v728 = vmul.f32 %v689, %v725
      %v729 = vmul.f32 %v690, %v725
      %v730 = vmul.f32 %v691, %v725
      %v731 = vmul.f32 %v692, %v725
      %v732 = vmul.f32 %v693, %v725
      %v733 = vmul.f32 %v694, %v725
      %v734 = vmul.f32 %v695, %v725
      %v735 = vmul.f32 %v696, %v725
      %v736 = vmul.f32 %v697, %v725
      %v737 = vmul.f32 %v698, %v725
      %v738 = vmul.f32 %v699, %v725
      %v739 = vmul.f32 %v700, %v725
      %v740 = vmul.f32 %v701, %v725
      %v741 = vmul.f32 %v702, %v725
      %v742 = vmul.f32 %v703, %v725
      %v743 = vmul.f32 %v704, %v725
      %v744 = vmul.f32 %v705, %v725
      %v745 = vmul.f32 %v706, %v725
      %v746 = vmul.f32 %v707, %v725
      %v747 = vmul.f32 %v708, %v725
      %v748 = vmul.f32 %v709, %v725
      %v749 = vmul.f32 %v710, %v725
      %v750 = vmul.f32 %v711, %v725
      %v751 = vmul.f32 %v712, %v725
      %v752 = vmul.f32 %v713, %v725
      %v753 = vmul.f32 %v714, %v725
      %v754 = vmul.f32 %v715, %v725
      %v755 = vmul.f32 %v716, %v725
      %v756 = vmul.f32 %v717, %v725
      %v757 = vmul.f32 %v718, %v725
      %v758 = vmul.f32 %v719, %v725
      %v759 = vld [vmem:[%s2] sm:$0x1]
      %v761 = vlaneseq
      %v762 = vshrl.u32 %v761, 7
      %v763 = vsub.s32 0, %v762
      %v764 = vrot.slane %v759, %v763
      %v766 = vadd.f32 %v727, %v764
      %v767 = vadd.f32 %v728, %v764
      %v768 = vadd.f32 %v729, %v764
      %v769 = vadd.f32 %v730, %v764
      %v770 = vadd.f32 %v731, %v764
      %v771 = vadd.f32 %v732, %v764
      %v772 = vadd.f32 %v733, %v764
      %v773 = vadd.f32 %v734, %v764
      %v774 = vadd.f32 %v735, %v764
      %v775 = vadd.f32 %v736, %v764
      %v776 = vadd.f32 %v737, %v764
      %v777 = vadd.f32 %v738, %v764
      %v778 = vadd.f32 %v739, %v764
      %v779 = vadd.f32 %v740, %v764
      %v780 = vadd.f32 %v741, %v764
      %v781 = vadd.f32 %v742, %v764
      %v782 = vadd.f32 %v743, %v764
      %v783 = vadd.f32 %v744, %v764
      %v784 = vadd.f32 %v745, %v764
      %v785 = vadd.f32 %v746, %v764
      %v786 = vadd.f32 %v747, %v764
      %v787 = vadd.f32 %v748, %v764
      %v788 = vadd.f32 %v749, %v764
      %v789 = vadd.f32 %v750, %v764
      %v790 = vadd.f32 %v751, %v764
      %v791 = vadd.f32 %v752, %v764
      %v792 = vadd.f32 %v753, %v764
      %v793 = vadd.f32 %v754, %v764
      %v794 = vadd.f32 %v755, %v764
      %v795 = vadd.f32 %v756, %v764
      %v796 = vadd.f32 %v757, %v764
      %v797 = vadd.f32 %v758, %v764
      %v798 = vpack.c.bf16 %v767, %v766
      %v799 = vpack.c.bf16 %v769, %v768
      %v800 = vpack.c.bf16 %v771, %v770
      %v801 = vpack.c.bf16 %v773, %v772
      %v802 = vpack.c.bf16 %v775, %v774
      %v803 = vpack.c.bf16 %v777, %v776
      %v804 = vpack.c.bf16 %v779, %v778
      %v805 = vpack.c.bf16 %v781, %v780
      %v806 = vpack.c.bf16 %v783, %v782
      %v807 = vpack.c.bf16 %v785, %v784
      %v808 = vpack.c.bf16 %v787, %v786
      %v809 = vpack.c.bf16 %v789, %v788
      %v810 = vpack.c.bf16 %v791, %v790
      %v811 = vpack.c.bf16 %v793, %v792
      %v812 = vpack.c.bf16 %v795, %v794
      %v813 = vpack.c.bf16 %v797, %v796
      %v814 = vld [vmem:[%s3] sm:$0xf]
      %v815 = vld [vmem:[%s3 + $0x4] sm:$0xf]
      %v816 = vld [vmem:[%s3 + $0x8] sm:$0xf]
      %v817 = vld [vmem:[%s3 + $0xc] sm:$0xf]
      %v822 = vunpack.c.l.b16 %v814
      %v823 = vunpack.c.l.b16 %v815
      %v824 = vunpack.c.l.b16 %v816
      %v825 = vunpack.c.l.b16 %v817
      %v826 = vpack.c.b16 %v823, %v822
      %v827 = vpack.c.b16 %v825, %v824
      %v831 = vsel %vm302, %v798, 0
      %v834 = vsel %vm302, %v799, 0
      %v837 = vsel %vm302, %v800, 0
      %v840 = vsel %vm302, %v801, 0
      %v843 = vsel %vm302, %v802, 0
      %v846 = vsel %vm302, %v803, 0
      %v849 = vsel %vm302, %v804, 0
      %v852 = vsel %vm302, %v805, 0
      %v855 = vsel %vm302, %v806, 0
      %v858 = vsel %vm302, %v807, 0
      %v861 = vsel %vm302, %v808, 0
      %v864 = vsel %vm302, %v809, 0
      %v867 = vsel %vm302, %v810, 0
      %v870 = vsel %vm302, %v811, 0
      %v873 = vsel %vm302, %v812, 0
      %v876 = vsel %vm302, %v813, 0
      %878 = vmatprep.subr.bf16.mxu0 0
      %879 = vmatpush1.bf16.msra.mxu0 %v826
      %880 = vmatprep.subr.bf16.mxu0 0
      %881 = vmatpush1.bf16.msra.mxu0 %v827
      %882 = vmatprep.subr.bf16.mxu0 0
      %883 = vmatpush1.bf16.msra.mxu0 0
      %884 = vmatprep.subr.bf16.mxu0 0
      %885 = vmatpush1.bf16.msra.mxu0 0
      %886 = vmatprep.subr.bf16.mxu0 0
      %887 = vmatpush1.bf16.msra.mxu0 0
      %888 = vmatprep.subr.bf16.mxu0 0
      %889 = vmatpush1.bf16.msra.mxu0 0
      %890 = vmatprep.subr.bf16.mxu0 0
      %891 = vmatpush1.bf16.msra.mxu0 0
      %892 = vmatprep.subr.bf16.mxu0 0
      %893 = vmatpush1.bf16.msra.mxu0 0
      %894 = vmatprep.subr.bf16.mxu0 0
      %895 = vmatpush1.bf16.msra.mxu0 0
      %896 = vmatprep.subr.bf16.mxu0 0
      %897 = vmatpush1.bf16.msra.mxu0 0
      %898 = vmatprep.subr.bf16.mxu0 0
      %899 = vmatpush1.bf16.msra.mxu0 0
      %900 = vmatprep.subr.bf16.mxu0 0
      %901 = vmatpush1.bf16.msra.mxu0 0
      %902 = vmatprep.subr.bf16.mxu0 0
      %903 = vmatpush1.bf16.msra.mxu0 0
      %904 = vmatprep.subr.bf16.mxu0 0
      %905 = vmatpush1.bf16.msra.mxu0 0
      %906 = vmatprep.subr.bf16.mxu0 0
      %907 = vmatpush1.bf16.msra.mxu0 0
      %908 = vmatprep.subr.bf16.mxu0 0
      %909 = vmatpush1.bf16.msra.mxu0 0
      %910 = vmatprep.mubr.bf16.mxu0 0
      %911 = vmatmul.mubr.bf16.gmra.mrb[0].mxu0 %v831
      %v912 = vpop.f32.mrb[0].mxu0
      %v913 = vadd.f32 0.0, %v912
      %v914 = vpop.f32.mrb[0].mxu0
      %v915 = vpop.f32.mrb[0].mxu0
      %v916 = vadd.f32 0.0, %v915
      %v917 = vpop.f32.mrb[0].mxu0
      %918 = vmatprep.mubr.bf16.mxu0 0
      %919 = vmatmul.mubr.bf16.gmra.mrb[0].mxu0 %v834
      %v920 = vpop.f32.mrb[0].mxu0
      %v921 = vadd.f32 0.0, %v920
      %v922 = vpop.f32.mrb[0].mxu0
      %v923 = vpop.f32.mrb[0].mxu0
      %v924 = vadd.f32 0.0, %v923
      %v925 = vpop.f32.mrb[0].mxu0
      %926 = vmatprep.mubr.bf16.mxu0 0
      %927 = vmatmul.mubr.bf16.gmra.mrb[0].mxu0 %v837
      %v928 = vpop.f32.mrb[0].mxu0
      %v929 = vadd.f32 0.0, %v928
      %v930 = vpop.f32.mrb[0].mxu0
      %v931 = vpop.f32.mrb[0].mxu0
      %v932 = vadd.f32 0.0, %v931
      %v933 = vpop.f32.mrb[0].mxu0
      %934 = vmatprep.mubr.bf16.mxu0 0
      %935 = vmatmul.mubr.bf16.gmra.mrb[0].mxu0 %v840
      %v936 = vpop.f32.mrb[0].mxu0
      %v937 = vadd.f32 0.0, %v936
      %v938 = vpop.f32.mrb[0].mxu0
      %v939 = vpop.f32.mrb[0].mxu0
      %v940 = vadd.f32 0.0, %v939
      %v941 = vpop.f32.mrb[0].mxu0
      %942 = vmatprep.mubr.bf16.mxu0 0
      %943 = vmatmul.mubr.bf16.gmra.mrb[0].mxu0 %v843
      %v944 = vpop.f32.mrb[0].mxu0
      %v945 = vadd.f32 0.0, %v944
      %v946 = vpop.f32.mrb[0].mxu0
      %v947 = vpop.f32.mrb[0].mxu0
      %v948 = vadd.f32 0.0, %v947
      %v949 = vpop.f32.mrb[0].mxu0
      %950 = vmatprep.mubr.bf16.mxu0 0
      %951 = vmatmul.mubr.bf16.gmra.mrb[0].mxu0 %v846
      %v952 = vpop.f32.mrb[0].mxu0
      %v953 = vadd.f32 0.0, %v952
      %v954 = vpop.f32.mrb[0].mxu0
      %v955 = vpop.f32.mrb[0].mxu0
      %v956 = vadd.f32 0.0, %v955
      %v957 = vpop.f32.mrb[0].mxu0
      %958 = vmatprep.mubr.bf16.mxu0 0
      %959 = vmatmul.mubr.bf16.gmra.mrb[0].mxu0 %v849
      %v960 = vpop.f32.mrb[0].mxu0
      %v961 = vadd.f32 0.0, %v960
      %v962 = vpop.f32.mrb[0].mxu0
      %v963 = vpop.f32.mrb[0].mxu0
      %v964 = vadd.f32 0.0, %v963
      %v965 = vpop.f32.mrb[0].mxu0
      %966 = vmatprep.mubr.bf16.mxu0 0
      %967 = vmatmul.mubr.bf16.gmra.mrb[0].mxu0 %v852
      %v968 = vpop.f32.mrb[0].mxu0
      %v969 = vadd.f32 0.0, %v968
      %v970 = vpop.f32.mrb[0].mxu0
      %v971 = vpop.f32.mrb[0].mxu0
      %v972 = vadd.f32 0.0, %v971
      %v973 = vpop.f32.mrb[0].mxu0
      %974 = vmatprep.mubr.bf16.mxu0 0
      %975 = vmatmul.mubr.bf16.gmra.mrb[0].mxu0 %v855
      %v976 = vpop.f32.mrb[0].mxu0
      %v977 = vadd.f32 0.0, %v976
      %v978 = vpop.f32.mrb[0].mxu0
      %v979 = vpop.f32.mrb[0].mxu0
      %v980 = vadd.f32 0.0, %v979
      %v981 = vpop.f32.mrb[0].mxu0
      %982 = vmatprep.mubr.bf16.mxu0 0
      %983 = vmatmul.mubr.bf16.gmra.mrb[0].mxu0 %v858
      %v984 = vpop.f32.mrb[0].mxu0
      %v985 = vadd.f32 0.0, %v984
      %v986 = vpop.f32.mrb[0].mxu0
      %v987 = vpop.f32.mrb[0].mxu0
      %v988 = vadd.f32 0.0, %v987
      %v989 = vpop.f32.mrb[0].mxu0
      %990 = vmatprep.mubr.bf16.mxu0 0
      %991 = vmatmul.mubr.bf16.gmra.mrb[0].mxu0 %v861
      %v992 = vpop.f32.mrb[0].mxu0
      %v993 = vadd.f32 0.0, %v992
      %v994 = vpop.f32.mrb[0].mxu0
      %v995 = vpop.f32.mrb[0].mxu0
      %v996 = vadd.f32 0.0, %v995
      %v997 = vpop.f32.mrb[0].mxu0
      %998 = vmatprep.mubr.bf16.mxu0 0
      %999 = vmatmul.mubr.bf16.gmra.mrb[0].mxu0 %v864
      %v1000 = vpop.f32.mrb[0].mxu0
      %v1001 = vadd.f32 0.0, %v1000
      %v1002 = vpop.f32.mrb[0].mxu0
      %v1003 = vpop.f32.mrb[0].mxu0
      %v1004 = vadd.f32 0.0, %v1003
      %v1005 = vpop.f32.mrb[0].mxu0
      %1006 = vmatprep.mubr.bf16.mxu0 0
      %1007 = vmatmul.mubr.bf16.gmra.mrb[0].mxu0 %v867
      %v1008 = vpop.f32.mrb[0].mxu0
      %v1009 = vadd.f32 0.0, %v1008
      %v1010 = vpop.f32.mrb[0].mxu0
      %v1011 = vpop.f32.mrb[0].mxu0
      %v1012 = vadd.f32 0.0, %v1011
      %v1013 = vpop.f32.mrb[0].mxu0
      %1014 = vmatprep.mubr.bf16.mxu0 0
      %1015 = vmatmul.mubr.bf16.gmra.mrb[0].mxu0 %v870
      %v1016 = vpop.f32.mrb[0].mxu0
      %v1017 = vadd.f32 0.0, %v1016
      %v1018 = vpop.f32.mrb[0].mxu0
      %v1019 = vpop.f32.mrb[0].mxu0
      %v1020 = vadd.f32 0.0, %v1019
      %v1021 = vpop.f32.mrb[0].mxu0
      %1022 = vmatprep.mubr.bf16.mxu0 0
      %1023 = vmatmul.mubr.bf16.gmra.mrb[0].mxu0 %v873
      %v1024 = vpop.f32.mrb[0].mxu0
      %v1025 = vadd.f32 0.0, %v1024
      %v1026 = vpop.f32.mrb[0].mxu0
      %v1027 = vpop.f32.mrb[0].mxu0
      %v1028 = vadd.f32 0.0, %v1027
      %v1029 = vpop.f32.mrb[0].mxu0
      %1030 = vmatprep.mubr.bf16.mxu0 0
      %1031 = vmatmul.mubr.bf16.gmra.mrb[0].mxu0 %v876
      %v1032 = vpop.f32.mrb[0].mxu0
      %v1033 = vadd.f32 0.0, %v1032
      %v1034 = vpop.f32.mrb[0].mxu0
      %v1035 = vpop.f32.mrb[0].mxu0
      %v1036 = vadd.f32 0.0, %v1035
      %v1037 = vpop.f32.mrb[0].mxu0
      %1038 = vdwg.mxu0
      %v1039 = vpack.c.bf16 %v916, %v913
      %v1040 = vpack.c.bf16 %v924, %v921
      %v1041 = vpack.c.bf16 %v932, %v929
      %v1042 = vpack.c.bf16 %v940, %v937
      %v1043 = vpack.c.bf16 %v948, %v945
      %v1044 = vpack.c.bf16 %v956, %v953
      %v1045 = vpack.c.bf16 %v964, %v961
      %v1046 = vpack.c.bf16 %v972, %v969
      %v1047 = vpack.c.bf16 %v980, %v977
      %v1048 = vpack.c.bf16 %v988, %v985
      %v1049 = vpack.c.bf16 %v996, %v993
      %v1050 = vpack.c.bf16 %v1004, %v1001
      %v1051 = vpack.c.bf16 %v1012, %v1009
      %v1052 = vpack.c.bf16 %v1020, %v1017
      %v1053 = vpack.c.bf16 %v1028, %v1025
      %v1054 = vpack.c.bf16 %v1036, %v1033
      %v1071 = vunpack.c.l.b16 %v1039
      %v1072 = vunpack.c.h.b16 %v1039
      %v1073 = vunpack.c.l.b16 %v1040
      %v1074 = vunpack.c.h.b16 %v1040
      %v1075 = vunpack.c.l.b16 %v1041
      %v1076 = vunpack.c.h.b16 %v1041
      %v1077 = vunpack.c.l.b16 %v1042
      %v1078 = vunpack.c.h.b16 %v1042
      %v1079 = vunpack.c.l.b16 %v1043
      %v1080 = vunpack.c.h.b16 %v1043
      %v1081 = vunpack.c.l.b16 %v1044
      %v1082 = vunpack.c.h.b16 %v1044
      %v1083 = vunpack.c.l.b16 %v1045
      %v1084 = vunpack.c.h.b16 %v1045
      %v1085 = vunpack.c.l.b16 %v1046
      %v1086 = vunpack.c.h.b16 %v1046
      %v1087 = vunpack.c.l.b16 %v1047
      %v1088 = vunpack.c.h.b16 %v1047
      %v1089 = vunpack.c.l.b16 %v1048
      %v1090 = vunpack.c.h.b16 %v1048
      %v1091 = vunpack.c.l.b16 %v1049
      %v1092 = vunpack.c.h.b16 %v1049
      %v1093 = vunpack.c.l.b16 %v1050
      %v1094 = vunpack.c.h.b16 %v1050
      %v1095 = vunpack.c.l.b16 %v1051
      %v1096 = vunpack.c.h.b16 %v1051
      %v1097 = vunpack.c.l.b16 %v1052
      %v1098 = vunpack.c.h.b16 %v1052
      %v1099 = vunpack.c.l.b16 %v1053
      %v1100 = vunpack.c.h.b16 %v1053
      %v1101 = vunpack.c.l.b16 %v1054
      %v1102 = vunpack.c.h.b16 %v1054
      %v1103 = vpack.c.b16 %v1071, %v1071
      %v1104 = vpack.c.b16 %v1072, %v1072
      %v1105 = vpack.c.b16 %v1073, %v1073
      %v1106 = vpack.c.b16 %v1074, %v1074
      %v1107 = vpack.c.b16 %v1075, %v1075
      %v1108 = vpack.c.b16 %v1076, %v1076
      %v1109 = vpack.c.b16 %v1077, %v1077
      %v1110 = vpack.c.b16 %v1078, %v1078
      %v1111 = vpack.c.b16 %v1079, %v1079
      %v1112 = vpack.c.b16 %v1080, %v1080
      %v1113 = vpack.c.b16 %v1081, %v1081
      %v1114 = vpack.c.b16 %v1082, %v1082
      %v1115 = vpack.c.b16 %v1083, %v1083
      %v1116 = vpack.c.b16 %v1084, %v1084
      %v1117 = vpack.c.b16 %v1085, %v1085
      %v1118 = vpack.c.b16 %v1086, %v1086
      %v1119 = vpack.c.b16 %v1087, %v1087
      %v1120 = vpack.c.b16 %v1088, %v1088
      %v1121 = vpack.c.b16 %v1089, %v1089
      %v1122 = vpack.c.b16 %v1090, %v1090
      %v1123 = vpack.c.b16 %v1091, %v1091
      %v1124 = vpack.c.b16 %v1092, %v1092
      %v1125 = vpack.c.b16 %v1093, %v1093
      %v1126 = vpack.c.b16 %v1094, %v1094
      %v1127 = vpack.c.b16 %v1095, %v1095
      %v1128 = vpack.c.b16 %v1096, %v1096
      %v1129 = vpack.c.b16 %v1097, %v1097
      %v1130 = vpack.c.b16 %v1098, %v1098
      %v1131 = vpack.c.b16 %v1099, %v1099
      %v1132 = vpack.c.b16 %v1100, %v1100
      %v1133 = vpack.c.b16 %v1101, %v1101
      %v1134 = vpack.c.b16 %v1102, %v1102
      %vm1167 = vcmask 519168
      %1168 = vst.msk [vmem:[%s261] sm:$0xf] %vm1167, %v1103
      %1169 = vst.msk [vmem:[%s261 + $0x4] sm:$0xf] %vm1167, %v1104
      %1170 = vst.msk [vmem:[%s261 + $0x8] sm:$0xf] %vm1167, %v1105
      %1171 = vst.msk [vmem:[%s261 + $0xc] sm:$0xf] %vm1167, %v1106
      %1172 = vst.msk [vmem:[%s261 + $0x10] sm:$0xf] %vm1167, %v1107
      %1173 = vst.msk [vmem:[%s261 + $0x14] sm:$0xf] %vm1167, %v1108
      %1174 = vst.msk [vmem:[%s261 + $0x18] sm:$0xf] %vm1167, %v1109
      %1175 = vst.msk [vmem:[%s261 + $0x1c] sm:$0xf] %vm1167, %v1110
      %1176 = vst.msk [vmem:[%s261 + $0x20] sm:$0xf] %vm1167, %v1111
      %1177 = vst.msk [vmem:[%s261 + $0x24] sm:$0xf] %vm1167, %v1112
      %1178 = vst.msk [vmem:[%s261 + $0x28] sm:$0xf] %vm1167, %v1113
      %1179 = vst.msk [vmem:[%s261 + $0x2c] sm:$0xf] %vm1167, %v1114
      %1180 = vst.msk [vmem:[%s261 + $0x30] sm:$0xf] %vm1167, %v1115
      %1181 = vst.msk [vmem:[%s261 + $0x34] sm:$0xf] %vm1167, %v1116
      %1182 = vst.msk [vmem:[%s261 + $0x38] sm:$0xf] %vm1167, %v1117
      %1183 = vst.msk [vmem:[%s261 + $0x3c] sm:$0xf] %vm1167, %v1118
      %1184 = vst.msk [vmem:[%s261 + $0x40] sm:$0xf] %vm1167, %v1119
      %1185 = vst.msk [vmem:[%s261 + $0x44] sm:$0xf] %vm1167, %v1120
      %1186 = vst.msk [vmem:[%s261 + $0x48] sm:$0xf] %vm1167, %v1121
      %1187 = vst.msk [vmem:[%s261 + $0x4c] sm:$0xf] %vm1167, %v1122
      %1188 = vst.msk [vmem:[%s261 + $0x50] sm:$0xf] %vm1167, %v1123
      %1189 = vst.msk [vmem:[%s261 + $0x54] sm:$0xf] %vm1167, %v1124
      %1190 = vst.msk [vmem:[%s261 + $0x58] sm:$0xf] %vm1167, %v1125
      %1191 = vst.msk [vmem:[%s261 + $0x5c] sm:$0xf] %vm1167, %v1126
      %1192 = vst.msk [vmem:[%s261 + $0x60] sm:$0xf] %vm1167, %v1127
      %1193 = vst.msk [vmem:[%s261 + $0x64] sm:$0xf] %vm1167, %v1128
      %1194 = vst.msk [vmem:[%s261 + $0x68] sm:$0xf] %vm1167, %v1129
      %1195 = vst.msk [vmem:[%s261 + $0x6c] sm:$0xf] %vm1167, %v1130
      %1196 = vst.msk [vmem:[%s261 + $0x70] sm:$0xf] %vm1167, %v1131
      %1197 = vst.msk [vmem:[%s261 + $0x74] sm:$0xf] %vm1167, %v1132
      %1198 = vst.msk [vmem:[%s261 + $0x78] sm:$0xf] %vm1167, %v1133
      %1199 = vst.msk [vmem:[%s261 + $0x7c] sm:$0xf] %vm1167, %v1134
      %v1200 = vld [vmem:[%s4] sm:$0xf]
      %v1201 = vld [vmem:[%s4 + $0x4] sm:$0xf]
      %v1202 = vld [vmem:[%s4 + $0x8] sm:$0xf]
      %v1203 = vld [vmem:[%s4 + $0xc] sm:$0xf]
      %v1208 = vunpack.c.l.b16 %v1200
      %v1209 = vunpack.c.l.b16 %v1201
      %v1210 = vunpack.c.l.b16 %v1202
      %v1211 = vunpack.c.l.b16 %v1203
      %v1212 = vpack.c.b16 %v1209, %v1208
      %v1213 = vpack.c.b16 %v1211, %v1210
      %1216 = vmatprep.subr.bf16.mxu0 0
      %1217 = vmatpush1.bf16.msra.mxu0 %v1212
      %1218 = vmatprep.subr.bf16.mxu0 0
      %1219 = vmatpush1.bf16.msra.mxu0 %v1213
      %1220 = vmatprep.subr.bf16.mxu0 0
      %1221 = vmatpush1.bf16.msra.mxu0 0
      %1222 = vmatprep.subr.bf16.mxu0 0
      %1223 = vmatpush1.bf16.msra.mxu0 0
      %1224 = vmatprep.subr.bf16.mxu0 0
      %1225 = vmatpush1.bf16.msra.mxu0 0
      %1226 = vmatprep.subr.bf16.mxu0 0
      %1227 = vmatpush1.bf16.msra.mxu0 0
      %1228 = vmatprep.subr.bf16.mxu0 0
      %1229 = vmatpush1.bf16.msra.mxu0 0
      %1230 = vmatprep.subr.bf16.mxu0 0
      %1231 = vmatpush1.bf16.msra.mxu0 0
      %1232 = vmatprep.subr.bf16.mxu0 0
      %1233 = vmatpush1.bf16.msra.mxu0 0
      %1234 = vmatprep.subr.bf16.mxu0 0
      %1235 = vmatpush1.bf16.msra.mxu0 0
      %1236 = vmatprep.subr.bf16.mxu0 0
      %1237 = vmatpush1.bf16.msra.mxu0 0
      %1238 = vmatprep.subr.bf16.mxu0 0
      %1239 = vmatpush1.bf16.msra.mxu0 0
      %1240 = vmatprep.subr.bf16.mxu0 0
      %1241 = vmatpush1.bf16.msra.mxu0 0
      %1242 = vmatprep.subr.bf16.mxu0 0
      %1243 = vmatpush1.bf16.msra.mxu0 0
      %1244 = vmatprep.subr.bf16.mxu0 0
      %1245 = vmatpush1.bf16.msra.mxu0 0
      %1246 = vmatprep.subr.bf16.mxu0 0
      %1247 = vmatpush1.bf16.msra.mxu0 0
      %1248 = vmatprep.mubr.bf16.mxu0 0
      %1249 = vmatmul.mubr.bf16.gmra.mrb[0].mxu0 %v831
      %v1250 = vpop.f32.mrb[0].mxu0
      %v1251 = vadd.f32 0.0, %v1250
      %v1252 = vpop.f32.mrb[0].mxu0
      %v1253 = vpop.f32.mrb[0].mxu0
      %v1254 = vadd.f32 0.0, %v1253
      %v1255 = vpop.f32.mrb[0].mxu0
      %1256 = vmatprep.mubr.bf16.mxu0 0
      %1257 = vmatmul.mubr.bf16.gmra.mrb[0].mxu0 %v834
      %v1258 = vpop.f32.mrb[0].mxu0
      %v1259 = vadd.f32 0.0, %v1258
      %v1260 = vpop.f32.mrb[0].mxu0
      %v1261 = vpop.f32.mrb[0].mxu0
      %v1262 = vadd.f32 0.0, %v1261
      %v1263 = vpop.f32.mrb[0].mxu0
      %1264 = vmatprep.mubr.bf16.mxu0 0
      %1265 = vmatmul.mubr.bf16.gmra.mrb[0].mxu0 %v837
      %v1266 = vpop.f32.mrb[0].mxu0
      %v1267 = vadd.f32 0.0, %v1266
      %v1268 = vpop.f32.mrb[0].mxu0
      %v1269 = vpop.f32.mrb[0].mxu0
      %v1270 = vadd.f32 0.0, %v1269
      %v1271 = vpop.f32.mrb[0].mxu0
      %1272 = vmatprep.mubr.bf16.mxu0 0
      %1273 = vmatmul.mubr.bf16.gmra.mrb[0].mxu0 %v840
      %v1274 = vpop.f32.mrb[0].mxu0
      %v1275 = vadd.f32 0.0, %v1274
      %v1276 = vpop.f32.mrb[0].mxu0
      %v1277 = vpop.f32.mrb[0].mxu0
      %v1278 = vadd.f32 0.0, %v1277
      %v1279 = vpop.f32.mrb[0].mxu0
      %1280 = vmatprep.mubr.bf16.mxu0 0
      %1281 = vmatmul.mubr.bf16.gmra.mrb[0].mxu0 %v843
      %v1282 = vpop.f32.mrb[0].mxu0
      %v1283 = vadd.f32 0.0, %v1282
      %v1284 = vpop.f32.mrb[0].mxu0
      %v1285 = vpop.f32.mrb[0].mxu0
      %v1286 = vadd.f32 0.0, %v1285
      %v1287 = vpop.f32.mrb[0].mxu0
      %1288 = vmatprep.mubr.bf16.mxu0 0
      %1289 = vmatmul.mubr.bf16.gmra.mrb[0].mxu0 %v846
      %v1290 = vpop.f32.mrb[0].mxu0
      %v1291 = vadd.f32 0.0, %v1290
      %v1292 = vpop.f32.mrb[0].mxu0
      %v1293 = vpop.f32.mrb[0].mxu0
      %v1294 = vadd.f32 0.0, %v1293
      %v1295 = vpop.f32.mrb[0].mxu0
      %1296 = vmatprep.mubr.bf16.mxu0 0
      %1297 = vmatmul.mubr.bf16.gmra.mrb[0].mxu0 %v849
      %v1298 = vpop.f32.mrb[0].mxu0
      %v1299 = vadd.f32 0.0, %v1298
      %v1300 = vpop.f32.mrb[0].mxu0
      %v1301 = vpop.f32.mrb[0].mxu0
      %v1302 = vadd.f32 0.0, %v1301
      %v1303 = vpop.f32.mrb[0].mxu0
      %1304 = vmatprep.mubr.bf16.mxu0 0
      %1305 = vmatmul.mubr.bf16.gmra.mrb[0].mxu0 %v852
      %v1306 = vpop.f32.mrb[0].mxu0
      %v1307 = vadd.f32 0.0, %v1306
      %v1308 = vpop.f32.mrb[0].mxu0
      %v1309 = vpop.f32.mrb[0].mxu0
      %v1310 = vadd.f32 0.0, %v1309
      %v1311 = vpop.f32.mrb[0].mxu0
      %1312 = vmatprep.mubr.bf16.mxu0 0
      %1313 = vmatmul.mubr.bf16.gmra.mrb[0].mxu0 %v855
      %v1314 = vpop.f32.mrb[0].mxu0
      %v1315 = vadd.f32 0.0, %v1314
      %v1316 = vpop.f32.mrb[0].mxu0
      %v1317 = vpop.f32.mrb[0].mxu0
      %v1318 = vadd.f32 0.0, %v1317
      %v1319 = vpop.f32.mrb[0].mxu0
      %1320 = vmatprep.mubr.bf16.mxu0 0
      %1321 = vmatmul.mubr.bf16.gmra.mrb[0].mxu0 %v858
      %v1322 = vpop.f32.mrb[0].mxu0
      %v1323 = vadd.f32 0.0, %v1322
      %v1324 = vpop.f32.mrb[0].mxu0
      %v1325 = vpop.f32.mrb[0].mxu0
      %v1326 = vadd.f32 0.0, %v1325
      %v1327 = vpop.f32.mrb[0].mxu0
      %1328 = vmatprep.mubr.bf16.mxu0 0
      %1329 = vmatmul.mubr.bf16.gmra.mrb[0].mxu0 %v861
      %v1330 = vpop.f32.mrb[0].mxu0
      %v1331 = vadd.f32 0.0, %v1330
      %v1332 = vpop.f32.mrb[0].mxu0
      %v1333 = vpop.f32.mrb[0].mxu0
      %v1334 = vadd.f32 0.0, %v1333
      %v1335 = vpop.f32.mrb[0].mxu0
      %1336 = vmatprep.mubr.bf16.mxu0 0
      %1337 = vmatmul.mubr.bf16.gmra.mrb[0].mxu0 %v864
      %v1338 = vpop.f32.mrb[0].mxu0
      %v1339 = vadd.f32 0.0, %v1338
      %v1340 = vpop.f32.mrb[0].mxu0
      %v1341 = vpop.f32.mrb[0].mxu0
      %v1342 = vadd.f32 0.0, %v1341
      %v1343 = vpop.f32.mrb[0].mxu0
      %1344 = vmatprep.mubr.bf16.mxu0 0
      %1345 = vmatmul.mubr.bf16.gmra.mrb[0].mxu0 %v867
      %v1346 = vpop.f32.mrb[0].mxu0
      %v1347 = vadd.f32 0.0, %v1346
      %v1348 = vpop.f32.mrb[0].mxu0
      %v1349 = vpop.f32.mrb[0].mxu0
      %v1350 = vadd.f32 0.0, %v1349
      %v1351 = vpop.f32.mrb[0].mxu0
      %1352 = vmatprep.mubr.bf16.mxu0 0
      %1353 = vmatmul.mubr.bf16.gmra.mrb[0].mxu0 %v870
      %v1354 = vpop.f32.mrb[0].mxu0
      %v1355 = vadd.f32 0.0, %v1354
      %v1356 = vpop.f32.mrb[0].mxu0
      %v1357 = vpop.f32.mrb[0].mxu0
      %v1358 = vadd.f32 0.0, %v1357
      %v1359 = vpop.f32.mrb[0].mxu0
      %1360 = vmatprep.mubr.bf16.mxu0 0
      %1361 = vmatmul.mubr.bf16.gmra.mrb[0].mxu0 %v873
      %v1362 = vpop.f32.mrb[0].mxu0
      %v1363 = vadd.f32 0.0, %v1362
      %v1364 = vpop.f32.mrb[0].mxu0
      %v1365 = vpop.f32.mrb[0].mxu0
      %v1366 = vadd.f32 0.0, %v1365
      %v1367 = vpop.f32.mrb[0].mxu0
      %1368 = vmatprep.mubr.bf16.mxu0 0
      %1369 = vmatmul.mubr.bf16.gmra.mrb[0].mxu0 %v876
      %v1370 = vpop.f32.mrb[0].mxu0
      %v1371 = vadd.f32 0.0, %v1370
      %v1372 = vpop.f32.mrb[0].mxu0
      %v1373 = vpop.f32.mrb[0].mxu0
      %v1374 = vadd.f32 0.0, %v1373
      %v1375 = vpop.f32.mrb[0].mxu0
      %1376 = vdwg.mxu0
      %v1377 = vpack.c.bf16 %v1254, %v1251
      %v1378 = vpack.c.bf16 %v1262, %v1259
      %v1379 = vpack.c.bf16 %v1270, %v1267
      %v1380 = vpack.c.bf16 %v1278, %v1275
      %v1381 = vpack.c.bf16 %v1286, %v1283
      %v1382 = vpack.c.bf16 %v1294, %v1291
      %v1383 = vpack.c.bf16 %v1302, %v1299
      %v1384 = vpack.c.bf16 %v1310, %v1307
      %v1385 = vpack.c.bf16 %v1318, %v1315
      %v1386 = vpack.c.bf16 %v1326, %v1323
      %v1387 = vpack.c.bf16 %v1334, %v1331
      %v1388 = vpack.c.bf16 %v1342, %v1339
      %v1389 = vpack.c.bf16 %v1350, %v1347
      %v1390 = vpack.c.bf16 %v1358, %v1355
      %v1391 = vpack.c.bf16 %v1366, %v1363
      %v1392 = vpack.c.bf16 %v1374, %v1371
      %v1409 = vunpack.c.l.b16 %v1377
      %v1410 = vunpack.c.h.b16 %v1377
      %v1411 = vunpack.c.l.b16 %v1378
      %v1412 = vunpack.c.h.b16 %v1378
      %v1413 = vunpack.c.l.b16 %v1379
      %v1414 = vunpack.c.h.b16 %v1379
      %v1415 = vunpack.c.l.b16 %v1380
      %v1416 = vunpack.c.h.b16 %v1380
      %v1417 = vunpack.c.l.b16 %v1381
      %v1418 = vunpack.c.h.b16 %v1381
      %v1419 = vunpack.c.l.b16 %v1382
      %v1420 = vunpack.c.h.b16 %v1382
      %v1421 = vunpack.c.l.b16 %v1383
      %v1422 = vunpack.c.h.b16 %v1383
      %v1423 = vunpack.c.l.b16 %v1384
      %v1424 = vunpack.c.h.b16 %v1384
      %v1425 = vunpack.c.l.b16 %v1385
      %v1426 = vunpack.c.h.b16 %v1385
      %v1427 = vunpack.c.l.b16 %v1386
      %v1428 = vunpack.c.h.b16 %v1386
      %v1429 = vunpack.c.l.b16 %v1387
      %v1430 = vunpack.c.h.b16 %v1387
      %v1431 = vunpack.c.l.b16 %v1388
      %v1432 = vunpack.c.h.b16 %v1388
      %v1433 = vunpack.c.l.b16 %v1389
      %v1434 = vunpack.c.h.b16 %v1389
      %v1435 = vunpack.c.l.b16 %v1390
      %v1436 = vunpack.c.h.b16 %v1390
      %v1437 = vunpack.c.l.b16 %v1391
      %v1438 = vunpack.c.h.b16 %v1391
      %v1439 = vunpack.c.l.b16 %v1392
      %v1440 = vunpack.c.h.b16 %v1392
      %v1441 = vpack.c.b16 %v1409, %v1409
      %v1442 = vpack.c.b16 %v1410, %v1410
      %v1443 = vpack.c.b16 %v1411, %v1411
      %v1444 = vpack.c.b16 %v1412, %v1412
      %v1445 = vpack.c.b16 %v1413, %v1413
      %v1446 = vpack.c.b16 %v1414, %v1414
      %v1447 = vpack.c.b16 %v1415, %v1415
      %v1448 = vpack.c.b16 %v1416, %v1416
      %v1449 = vpack.c.b16 %v1417, %v1417
      %v1450 = vpack.c.b16 %v1418, %v1418
      %v1451 = vpack.c.b16 %v1419, %v1419
      %v1452 = vpack.c.b16 %v1420, %v1420
      %v1453 = vpack.c.b16 %v1421, %v1421
      %v1454 = vpack.c.b16 %v1422, %v1422
      %v1455 = vpack.c.b16 %v1423, %v1423
      %v1456 = vpack.c.b16 %v1424, %v1424
      %v1457 = vpack.c.b16 %v1425, %v1425
      %v1458 = vpack.c.b16 %v1426, %v1426
      %v1459 = vpack.c.b16 %v1427, %v1427
      %v1460 = vpack.c.b16 %v1428, %v1428
      %v1461 = vpack.c.b16 %v1429, %v1429
      %v1462 = vpack.c.b16 %v1430, %v1430
      %v1463 = vpack.c.b16 %v1431, %v1431
      %v1464 = vpack.c.b16 %v1432, %v1432
      %v1465 = vpack.c.b16 %v1433, %v1433
      %v1466 = vpack.c.b16 %v1434, %v1434
      %v1467 = vpack.c.b16 %v1435, %v1435
      %v1468 = vpack.c.b16 %v1436, %v1436
      %v1469 = vpack.c.b16 %v1437, %v1437
      %v1470 = vpack.c.b16 %v1438, %v1438
      %v1471 = vpack.c.b16 %v1439, %v1439
      %v1472 = vpack.c.b16 %v1440, %v1440
      %1505 = vst.msk [vmem:[%s267] sm:$0xf] %vm1167, %v1441
      %1506 = vst.msk [vmem:[%s267 + $0x4] sm:$0xf] %vm1167, %v1442
      %1507 = vst.msk [vmem:[%s267 + $0x8] sm:$0xf] %vm1167, %v1443
      %1508 = vst.msk [vmem:[%s267 + $0xc] sm:$0xf] %vm1167, %v1444
      %1509 = vst.msk [vmem:[%s267 + $0x10] sm:$0xf] %vm1167, %v1445
      %1510 = vst.msk [vmem:[%s267 + $0x14] sm:$0xf] %vm1167, %v1446
      %1511 = vst.msk [vmem:[%s267 + $0x18] sm:$0xf] %vm1167, %v1447
      %1512 = vst.msk [vmem:[%s267 + $0x1c] sm:$0xf] %vm1167, %v1448
      %1513 = vst.msk [vmem:[%s267 + $0x20] sm:$0xf] %vm1167, %v1449
      %1514 = vst.msk [vmem:[%s267 + $0x24] sm:$0xf] %vm1167, %v1450
      %1515 = vst.msk [vmem:[%s267 + $0x28] sm:$0xf] %vm1167, %v1451
      %1516 = vst.msk [vmem:[%s267 + $0x2c] sm:$0xf] %vm1167, %v1452
      %1517 = vst.msk [vmem:[%s267 + $0x30] sm:$0xf] %vm1167, %v1453
      %1518 = vst.msk [vmem:[%s267 + $0x34] sm:$0xf] %vm1167, %v1454
      %1519 = vst.msk [vmem:[%s267 + $0x38] sm:$0xf] %vm1167, %v1455
      %1520 = vst.msk [vmem:[%s267 + $0x3c] sm:$0xf] %vm1167, %v1456
      %1521 = vst.msk [vmem:[%s267 + $0x40] sm:$0xf] %vm1167, %v1457
      %1522 = vst.msk [vmem:[%s267 + $0x44] sm:$0xf] %vm1167, %v1458
      %1523 = vst.msk [vmem:[%s267 + $0x48] sm:$0xf] %vm1167, %v1459
      %1524 = vst.msk [vmem:[%s267 + $0x4c] sm:$0xf] %vm1167, %v1460
      %1525 = vst.msk [vmem:[%s267 + $0x50] sm:$0xf] %vm1167, %v1461
      %1526 = vst.msk [vmem:[%s267 + $0x54] sm:$0xf] %vm1167, %v1462
      %1527 = vst.msk [vmem:[%s267 + $0x58] sm:$0xf] %vm1167, %v1463
      %1528 = vst.msk [vmem:[%s267 + $0x5c] sm:$0xf] %vm1167, %v1464
      %1529 = vst.msk [vmem:[%s267 + $0x60] sm:$0xf] %vm1167, %v1465
      %1530 = vst.msk [vmem:[%s267 + $0x64] sm:$0xf] %vm1167, %v1466
      %1531 = vst.msk [vmem:[%s267 + $0x68] sm:$0xf] %vm1167, %v1467
      %1532 = vst.msk [vmem:[%s267 + $0x6c] sm:$0xf] %vm1167, %v1468
      %1533 = vst.msk [vmem:[%s267 + $0x70] sm:$0xf] %vm1167, %v1469
      %1534 = vst.msk [vmem:[%s267 + $0x74] sm:$0xf] %vm1167, %v1470
      %1535 = vst.msk [vmem:[%s267 + $0x78] sm:$0xf] %vm1167, %v1471
      %1536 = vst.msk [vmem:[%s267 + $0x7c] sm:$0xf] %vm1167, %v1472
      %s1537 = smul.u32 32, %s18
      %p1538 = scmp.lt.s32.totalorder %s1537, 63
      %s1539 = scalar_select %p1538, %s1537, 63
      %s1540 = smul.addr %s1539, 4
      %s1541 = scalar_lea.vmem %s5, %s1540
      %s1542 = smul.u32 32, %s18
      %p1543 = scmp.lt.s32.totalorder %s1542, 63
      %s1544 = scalar_select %p1543, %s1542, 63
      %s1545 = smul.addr %s1544, 4
      %s1546 = scalar_lea.vmem %s6, %s1545
      // Predicated region
      $region41: #{tpu_custom_call.1} parent=39 // pred_check
        %p1547 = pneg %p146
      $region42: #{tpu_custom_call.1} parent=39 // pred_check_branch
        %1549 = sbr.rel (%p1547) target = $region44
      $region43: #{tpu_custom_call.1} parent=39 // pred_region
        %s1550 = smul.u32 32, %s18
      $region44: #{tpu_custom_call.1} parent=39 // pred_fallthru
        _
      // Predicated region
      $region45: #{tpu_custom_call.1} parent=39 // pred_check
        %p1551 = pneg %p172
      $region46: #{tpu_custom_call.1} parent=39 // pred_check_branch
        %1553 = sbr.rel (%p1551) target = $region48
      $region47: #{tpu_custom_call.1} parent=39 // pred_region
        %s1554 = smul.u32 32, %s18
      $region48: #{tpu_custom_call.1} parent=39 // pred_fallthru
        _
    $region40: #{tpu_custom_call.1} parent=5 // pred_fallthru
      _
    %p1555 = scmp.le.s32.totalorder 2, %s13
    // Predicated region
    $region49: #{tpu_custom_call.1} parent=5 // pred_check
      %p1556 = pneg %p1555
    $region50: #{tpu_custom_call.1} parent=5 // pred_check_branch
      %1558 = sbr.rel (%p1556) target = $region52
    $region51: #{tpu_custom_call.1} parent=5 // pred_region
      %s1559 = ssub.s32 %s13, 2
      // Predicated region
      $region53: #{tpu_custom_call.1} parent=51 // pred_check
        %p1560 = pneg %p152
      $region54: #{tpu_custom_call.1} parent=51 // pred_check_branch
        %1562 = sbr.rel (%p1560) target = $region56
      $region55: #{tpu_custom_call.1} parent=51 // pred_region
        %s1563 = smul.u32 32, %s19
        %p1564 = scmp.lt.s32.totalorder %s1563, 63
        %s1565 = scalar_select %p1564, %s1563, 63
        %s1566 = smul.addr %s1565, 4
        %s1567 = scalar_lea.vmem %s5, %s1566
      $region56: #{tpu_custom_call.1} parent=51 // pred_fallthru
        _
      // Predicated region
      $region57: #{tpu_custom_call.1} parent=51 // pred_check
        %p1568 = pneg %p178
      $region58: #{tpu_custom_call.1} parent=51 // pred_check_branch
        %1570 = sbr.rel (%p1568) target = $region60
      $region59: #{tpu_custom_call.1} parent=51 // pred_region
        %s1571 = smul.u32 32, %s19
        %p1572 = scmp.lt.s32.totalorder %s1571, 63
        %s1573 = scalar_select %p1572, %s1571, 63
        %s1574 = smul.addr %s1573, 4
        %s1575 = scalar_lea.vmem %s6, %s1574
      $region60: #{tpu_custom_call.1} parent=51 // pred_fallthru
        _
    $region52: #{tpu_custom_call.1} parent=5 // pred_fallthru
      _
  $region6: #{tpu_custom_call.1} parent=0 // loop_footer
    %s17 = sadd.s32 1, %s13
  $region7: #{tpu_custom_call.1} parent=0 // loop_footer_branch
    %12 = sbr.rel target = $region3
  $region8: #{tpu_custom_call.1} parent=0 // loop_exit
    _

</llo_original>
